<compile_context>
chip_gen: v5e
topology: v5e:2x2
jax: 0.10.0
libtpu: 0.0.40
codegen_flags: <defaults>
</compile_context>

<pallas_src>
import functools

import jax
import jax.numpy as jnp
from jax import lax
from jax.experimental import pallas as pl
from jax.experimental.pallas import tpu as pltpu

EPS = 1e-5


# ---------------------------------------------------------------------------
# Kernels 1 & 2: (optional folded-BN affine + ReLU on the input) -> 3x3 conv
#                -> raw conv output + per-column sum / sum-of-squares.
# One grid step = one image; everything stays lane-dense (rows=H, lanes=W*C).
# ---------------------------------------------------------------------------
def _conv_stats_kernel(apply_input_bn_relu, C, x_ref, wbig_ref, scale_ref,
                       shift_ref, z_ref, s1_ref, s2_ref, pbuf):
    H = x_ref.shape[1]
    WC = x_ref.shape[2]
    W = WC // C

    xin = x_ref[0]                                      # (H, W*C), lane-dense
    if apply_input_bn_relu:
        # folded BatchNorm: scale/shift already contain mean/var/gamma/beta
        xin = jnp.maximum(xin * scale_ref[...] + shift_ref[...], 0.0)

    # --- build the zero-padded image in scratch ---------------------------
    # only the 1-pixel border is cleared (interior is fully overwritten each
    # step), which also keeps the kernel safe under a "parallel" grid axis.
    pbuf[0:1, :] = jnp.zeros((1, (W + 2) * C), jnp.float32)
    pbuf[H + 1:H + 2, :] = jnp.zeros((1, (W + 2) * C), jnp.float32)
    pbuf[:, 0:C] = jnp.zeros((H + 2, C), jnp.float32)
    pbuf[:, (W + 1) * C:(W + 2) * C] = jnp.zeros((H + 2, C), jnp.float32)
    pbuf[1:H + 1, C:C + WC] = xin

    # --- im2col: 9 lane-dense shifted taps -> ONE MXU dot ------------------
    patches = jnp.concatenate(
        [pbuf[dy:dy + H, dx * C:dx * C + WC]
         for dy in range(3) for dx in range(3)], axis=1)       # (H, 9*W*C)
    z = jnp.dot(patches, wbig_ref[...],
                preferred_element_type=jnp.float32)            # (H, W*C)

    z_ref[0] = z
    # per-(x, c) column partial sums for the two-phase BatchNorm
    s1_ref[0] = jnp.sum(z, axis=0, keepdims=True)
    s2_ref[0] = jnp.sum(z * z, axis=0, keepdims=True)


def _conv_pass(act, wbig, scale_l, shift_l, *, C, apply_input_bn_relu):
    N, H, WC = act.shape
    W = WC // C
    kernel = functools.partial(_conv_stats_kernel, apply_input_bn_relu, C)
    return pl.pallas_call(
        kernel,
        out_shape=[jax.ShapeDtypeStruct((N, H, WC), jnp.float32),
                   jax.ShapeDtypeStruct((N, 1, WC), jnp.float32),
                   jax.ShapeDtypeStruct((N, 1, WC), jnp.float32)],
        grid=(N,),
        in_specs=[pl.BlockSpec((1, H, WC), lambda b: (b, 0, 0)),
                  pl.BlockSpec(wbig.shape, lambda b: (0, 0)),   # resident
                  pl.BlockSpec((1, WC), lambda b: (0, 0)),
                  pl.BlockSpec((1, WC), lambda b: (0, 0))],
        out_specs=[pl.BlockSpec((1, H, WC), lambda b: (b, 0, 0)),
                   pl.BlockSpec((1, 1, WC), lambda b: (b, 0, 0)),
                   pl.BlockSpec((1, 1, WC), lambda b: (b, 0, 0))],
        scratch_shapes=[pltpu.VMEM((H + 2, (W + 2) * C), jnp.float32)],
        compiler_params=pltpu.CompilerParams(
            dimension_semantics=("parallel",)),
    )(act, wbig, scale_l, shift_l)


# ---------------------------------------------------------------------------
# Kernel 3: bn2 (folded affine) + residual add + final ReLU, fully lane-dense.
# ---------------------------------------------------------------------------
def _bn_add_relu_kernel(z_ref, x_ref, scale_ref, shift_ref, out_ref):
    out_ref[...] = jnp.maximum(
        z_ref[...] * scale_ref[...] + shift_ref[...] + x_ref[...], 0.0)


def _bn_add_relu(z, x, scale_l, shift_l):
    N, H, WC = z.shape
    return pl.pallas_call(
        _bn_add_relu_kernel,
        out_shape=jax.ShapeDtypeStruct((N, H, WC), jnp.float32),
        grid=(N,),
        in_specs=[pl.BlockSpec((1, H, WC), lambda b: (b, 0, 0)),
                  pl.BlockSpec((1, H, WC), lambda b: (b, 0, 0)),
                  pl.BlockSpec((1, WC), lambda b: (0, 0)),
                  pl.BlockSpec((1, WC), lambda b: (0, 0))],
        out_specs=pl.BlockSpec((1, H, WC), lambda b: (b, 0, 0)),
        compiler_params=pltpu.CompilerParams(
            dimension_semantics=("parallel",)),
    )(z, x, scale_l, shift_l)


# ---------------------------------------------------------------------------
# Host-side helpers (tiny, run once per call).
# ---------------------------------------------------------------------------
def _blockdiag_conv_weights(w_hwio, W):
    """HWIO (3,3,Cin,Cout) -> (9*W*Cin, W*Cout) block-diagonal matrix so that
    a lane-dense (H, W*Cin) tap patch times this matrix equals the conv out."""
    KH, KW, Cin, Cout = w_hwio.shape
    taps = w_hwio.reshape(KH * KW, Cin, Cout).astype(jnp.float32)
    eye = jnp.eye(W, dtype=jnp.float32)
    return jnp.concatenate(
        [jnp.kron(eye, taps[t]) for t in range(KH * KW)], axis=0)


def _bn_scale_shift(colsum, colsumsq, gamma, beta, count, W, C):
    """Two-phase training-mode BN: reduce per-(x,c) column partial sums to
    per-channel scale/shift, then tile per-lane for the fused (W*C) layout."""
    s1 = jnp.sum(colsum, axis=(0, 1)).reshape(W, C).sum(axis=0)     # (C,)
    s2 = jnp.sum(colsumsq, axis=(0, 1)).reshape(W, C).sum(axis=0)
    mean = s1 / count
    var = s2 / count - mean * mean                  # biased var (PyTorch fwd)
    scale_c = gamma.astype(jnp.float32) * lax.rsqrt(var + EPS)
    shift_c = beta.astype(jnp.float32) - mean * scale_c
    return (jnp.tile(scale_c, W).reshape(1, W * C),
            jnp.tile(shift_c, W).reshape(1, W * C))


def residual_block_nhwc(x_nhwc, w1_hwio, gamma1, beta1, w2_hwio, gamma2, beta2):
    N, H, W, C = x_nhwc.shape
    assert w1_hwio.shape == (3, 3, C, C) and w2_hwio.shape == (3, 3, C, C), \
        "identity residual (downsample=None) needs in_channels == out_channels"
    WC = W * C
    count = N * H * W

    x2 = x_nhwc.astype(jnp.float32).reshape(N, H, WC)        # lane-dense
    wbig1 = _blockdiag_conv_weights(w1_hwio, W)
    wbig2 = _blockdiag_conv_weights(w2_hwio, W)
    ones = jnp.ones((1, WC), jnp.float32)
    zeros = jnp.zeros((1, WC), jnp.float32)

    # pass 1: conv1 + per-column stats
    z1, s1, q1 = _conv_pass(x2, wbig1, ones, zeros, C=C,
                            apply_input_bn_relu=False)
    scale1, shift1 = _bn_scale_shift(s1, q1, gamma1, beta1, count, W, C)

    # pass 2: (bn1 + relu fused on the input) -> conv2 + per-column stats
    z2, s2, q2 = _conv_pass(z1, wbig2, scale1, shift1, C=C,
                            apply_input_bn_relu=True)
    scale2, shift2 = _bn_scale_shift(s2, q2, gamma2, beta2, count, W, C)

    # pass 3: bn2 + residual add + relu (pure lane-dense elementwise)
    out = _bn_add_relu(z2, x2, scale2, shift2)
    return out.reshape(N, H, W, C)


def residual_block_nchw(x_nchw, w1_oihw, gamma1, beta1, w2_oihw, gamma2, beta2):
    """Matches PyTorch ResidualBlock.forward (training-mode BN) on NCHW input."""
    x_nhwc = jnp.transpose(x_nchw, (0, 2, 3, 1))
    w1 = jnp.transpose(w1_oihw, (2, 3, 1, 0))      # OIHW -> HWIO
    w2 = jnp.transpose(w2_oihw, (2, 3, 1, 0))
    out = residual_block_nhwc(x_nhwc, w1, gamma1, beta1, w2, gamma2, beta2)
    return jnp.transpose(out, (0, 3, 1, 2))


# ---------------------------------------------------------------------------
# Pure-JAX reference (mirrors the PyTorch module directly, NCHW / OIHW).
# ---------------------------------------------------------------------------
def residual_block_ref_nchw(x, w1, g1, b1, w2, g2, b2):
    def conv(inp, w):
        return lax.conv_general_dilated(
            inp, w, window_strides=(1, 1), padding='SAME',
            dimension_numbers=('NCHW', 'OIHW', 'NCHW'),
            precision=lax.Precision.HIGHEST)

    def bn(y, g, b):
        m = jnp.mean(y, axis=(0, 2, 3), keepdims=True)
        v = jnp.mean((y - m) ** 2, axis=(0, 2, 3), keepdims=True)
        return (y - m) * lax.rsqrt(v + EPS) * g.reshape(1, -1, 1, 1) \
            + b.reshape(1, -1, 1, 1)

    out = jnp.maximum(bn(conv(x, w1), g1, b1), 0.0)
    out = bn(conv(out, w2), g2, b2)
    return jnp.maximum(out + x, 0.0)


if __name__ == "__main__":
    # in_channels == out_channels, stride=1, downsample=None; W*C = 128 lanes.
    N, C, H, W = 2, 8, 16, 16

    key = jax.random.PRNGKey(0)
    kx, kw1, kw2, kg1, kb1, kg2, kb2 = jax.random.split(key, 7)

    x_nchw = jax.random.normal(kx, (N, C, H, W), jnp.float32)
    w1_oihw = jax.random.normal(kw1, (C, C, 3, 3), jnp.float32) * 0.1
    w2_oihw = jax.random.normal(kw2, (C, C, 3, 3), jnp.float32) * 0.1
    gamma1 = 1.0 + 0.1 * jax.random.normal(kg1, (C,), jnp.float32)
    beta1 = 0.1 * jax.random.normal(kb1, (C,), jnp.float32)
    gamma2 = 1.0 + 0.1 * jax.random.normal(kg2, (C,), jnp.float32)
    beta2 = 0.1 * jax.random.normal(kb2, (C,), jnp.float32)

    out = jax.jit(residual_block_nchw)(
        x_nchw, w1_oihw, gamma1, beta1, w2_oihw, gamma2, beta2)
    out = jax.block_until_ready(out)

    ref = residual_block_ref_nchw(
        x_nchw, w1_oihw, gamma1, beta1, w2_oihw, gamma2, beta2)
    ref = jax.block_until_ready(ref)

    assert out.shape == (N, C, H, W)
    max_diff = jnp.max(jnp.abs(out - ref))
    assert jnp.allclose(out, ref, atol=5e-4, rtol=5e-4), \
        f"max abs diff {max_diff}"

    print("KERNEL_OK")
</pallas_src>

<mosaic_0001>
module attributes {stable_mosaic.version = 11 : i64} {
  func.func @_conv_stats_kernel(%arg0: i32, %arg1: memref<1x16x128xf32, #tpu.memory_space<vmem>>, %arg2: memref<1152x128xf32, #tpu.memory_space<vmem>>, %arg3: memref<1x128xf32, #tpu.memory_space<vmem>>, %arg4: memref<1x128xf32, #tpu.memory_space<vmem>>, %arg5: memref<1x16x128xf32, #tpu.memory_space<vmem>>, %arg6: memref<1x1x128xf32, #tpu.memory_space<vmem>>, %arg7: memref<1x1x128xf32, #tpu.memory_space<vmem>>, %arg8: memref<18x144xf32, #tpu.memory_space<vmem>>) attributes {dimension_semantics = [#tpu.dimension_semantics<parallel>], iteration_bounds = array<i64: 2>, scalar_prefetch = 0 : i64, scratch_operands = 1 : i64, tpu.core_type = #tpu.core_type<tc>, window_params = [{transform_indices = @transform_0, window_bounds = array<i64: 1, 16, 128>}, {pipeline_mode = #tpu.pipeline_mode<synchronous>, transform_indices = @transform_1, window_bounds = array<i64: 1152, 128>}, {pipeline_mode = #tpu.pipeline_mode<synchronous>, transform_indices = @transform_2, window_bounds = array<i64: 1, 128>}, {pipeline_mode = #tpu.pipeline_mode<synchronous>, transform_indices = @transform_3, window_bounds = array<i64: 1, 128>}, {transform_indices = @transform_4, window_bounds = array<i64: 1, 16, 128>}, {transform_indices = @transform_5, window_bounds = array<i64: 1, 1, 128>}, {transform_indices = @transform_6, window_bounds = array<i64: 1, 1, 128>}]} {
    %c0 = arith.constant 0 : index
    %c0_0 = arith.constant 0 : index
    %c0_1 = arith.constant 0 : index
    %0 = vector.load %arg1[%c0, %c0_0, %c0_1] : memref<1x16x128xf32, #tpu.memory_space<vmem>>, vector<1x16x128xf32>
    %1 = vector.shape_cast %0 : vector<1x16x128xf32> to vector<16x128xf32>
    %cst = arith.constant 0.000000e+00 : f32
    %2 = vector.broadcast %cst : f32 to vector<1x144xf32>
    %c0_2 = arith.constant 0 : index
    %c0_3 = arith.constant 0 : index
    %3 = vector.load %arg8[%c0_2, %c0_3] : memref<18x144xf32, #tpu.memory_space<vmem>>, vector<1x144xf32>
    tpu.vector_store %arg8[%c0_2, %c0_3], %2 {strides = array<i32>} : memref<18x144xf32, #tpu.memory_space<vmem>>, vector<1x144xf32>,
    %cst_4 = arith.constant 0.000000e+00 : f32
    %4 = vector.broadcast %cst_4 : f32 to vector<1x144xf32>
    %c17 = arith.constant 17 : index
    %c0_5 = arith.constant 0 : index
    %5 = vector.load %arg8[%c17, %c0_5] : memref<18x144xf32, #tpu.memory_space<vmem>>, vector<1x144xf32>
    tpu.vector_store %arg8[%c17, %c0_5], %4 {strides = array<i32>} : memref<18x144xf32, #tpu.memory_space<vmem>>, vector<1x144xf32>,
    %cst_6 = arith.constant 0.000000e+00 : f32
    %6 = vector.broadcast %cst_6 : f32 to vector<18x8xf32>
    %c0_7 = arith.constant 0 : index
    %c0_8 = arith.constant 0 : index
    %7 = vector.load %arg8[%c0_7, %c0_8] : memref<18x144xf32, #tpu.memory_space<vmem>>, vector<18x8xf32>
    tpu.vector_store %arg8[%c0_7, %c0_8], %6 {strides = array<i32>} : memref<18x144xf32, #tpu.memory_space<vmem>>, vector<18x8xf32>,
    %cst_9 = arith.constant 0.000000e+00 : f32
    %8 = vector.broadcast %cst_9 : f32 to vector<18x8xf32>
    %c0_10 = arith.constant 0 : index
    %c136 = arith.constant 136 : index
    %9 = vector.load %arg8[%c0_10, %c136] : memref<18x144xf32, #tpu.memory_space<vmem>>, vector<18x8xf32>
    tpu.vector_store %arg8[%c0_10, %c136], %8 {strides = array<i32>} : memref<18x144xf32, #tpu.memory_space<vmem>>, vector<18x8xf32>,
    %c1 = arith.constant 1 : index
    %c8 = arith.constant 8 : index
    %10 = vector.load %arg8[%c1, %c8] : memref<18x144xf32, #tpu.memory_space<vmem>>, vector<16x128xf32>
    tpu.vector_store %arg8[%c1, %c8], %1 {strides = array<i32>} : memref<18x144xf32, #tpu.memory_space<vmem>>, vector<16x128xf32>,
    %c0_11 = arith.constant 0 : index
    %c0_12 = arith.constant 0 : index
    %11 = vector.load %arg8[%c0_11, %c0_12] : memref<18x144xf32, #tpu.memory_space<vmem>>, vector<16x128xf32>
    %c0_13 = arith.constant 0 : index
    %c8_14 = arith.constant 8 : index
    %12 = vector.load %arg8[%c0_13, %c8_14] : memref<18x144xf32, #tpu.memory_space<vmem>>, vector<16x128xf32>
    %c0_15 = arith.constant 0 : index
    %c16 = arith.constant 16 : index
    %13 = vector.load %arg8[%c0_15, %c16] : memref<18x144xf32, #tpu.memory_space<vmem>>, vector<16x128xf32>
    %c1_16 = arith.constant 1 : index
    %c0_17 = arith.constant 0 : index
    %14 = vector.load %arg8[%c1_16, %c0_17] : memref<18x144xf32, #tpu.memory_space<vmem>>, vector<16x128xf32>
    %c1_18 = arith.constant 1 : index
    %c8_19 = arith.constant 8 : index
    %15 = vector.load %arg8[%c1_18, %c8_19] : memref<18x144xf32, #tpu.memory_space<vmem>>, vector<16x128xf32>
    %c1_20 = arith.constant 1 : index
    %c16_21 = arith.constant 16 : index
    %16 = vector.load %arg8[%c1_20, %c16_21] : memref<18x144xf32, #tpu.memory_space<vmem>>, vector<16x128xf32>
    %c2 = arith.constant 2 : index
    %c0_22 = arith.constant 0 : index
    %17 = vector.load %arg8[%c2, %c0_22] : memref<18x144xf32, #tpu.memory_space<vmem>>, vector<16x128xf32>
    %c2_23 = arith.constant 2 : index
    %c8_24 = arith.constant 8 : index
    %18 = vector.load %arg8[%c2_23, %c8_24] : memref<18x144xf32, #tpu.memory_space<vmem>>, vector<16x128xf32>
    %c2_25 = arith.constant 2 : index
    %c16_26 = arith.constant 16 : index
    %19 = vector.load %arg8[%c2_25, %c16_26] : memref<18x144xf32, #tpu.memory_space<vmem>>, vector<16x128xf32>
    %20 = tpu.concatenate %11, %12, %13, %14, %15, %16, %17, %18, %19 in 1 : vector<16x128xf32>, vector<16x128xf32>, vector<16x128xf32>, vector<16x128xf32>, vector<16x128xf32>, vector<16x128xf32>, vector<16x128xf32>, vector<16x128xf32>, vector<16x128xf32> -> vector<16x1152xf32>
    %c0_27 = arith.constant 0 : index
    %c0_28 = arith.constant 0 : index
    %21 = vector.load %arg2[%c0_27, %c0_28] : memref<1152x128xf32, #tpu.memory_space<vmem>>, vector<1152x128xf32>
    %cst_29 = arith.constant dense<0.000000e+00> : vector<16x128xf32>
    %22 = tpu.matmul %20, %21, %cst_29 {dimension_numbers = #tpu.dot_dimension_numbers<[1], [0], [0], [1], [0, 0, 1, 1], [], []>} : vector<16x1152xf32>, vector<1152x128xf32>, vector<16x128xf32> -> vector<16x128xf32>
    %c0_30 = arith.constant 0 : index
    %c0_31 = arith.constant 0 : index
    %c0_32 = arith.constant 0 : index
    %23 = vector.load %arg5[%c0_30, %c0_31, %c0_32] : memref<1x16x128xf32, #tpu.memory_space<vmem>>, vector<1x16x128xf32>
    %24 = vector.shape_cast %23 : vector<1x16x128xf32> to vector<16x128xf32>
    %25 = vector.shape_cast %22 : vector<16x128xf32> to vector<1x16x128xf32>
    tpu.vector_store %arg5[%c0_30, %c0_31, %c0_32], %25 {strides = array<i32>} : memref<1x16x128xf32, #tpu.memory_space<vmem>>, vector<1x16x128xf32>,
    %cst_33 = arith.constant dense<0.000000e+00> : vector<128xf32>
    %26 = vector.multi_reduction <add>, %22, %cst_33 [0] : vector<16x128xf32> to vector<128xf32>
    %27 = vector.shape_cast %26 : vector<128xf32> to vector<1x128xf32>
    %c0_34 = arith.constant 0 : index
    %c0_35 = arith.constant 0 : index
    %c0_36 = arith.constant 0 : index
    %28 = vector.load %arg6[%c0_34, %c0_35, %c0_36] : memref<1x1x128xf32, #tpu.memory_space<vmem>>, vector<1x1x128xf32>
    %29 = vector.shape_cast %28 : vector<1x1x128xf32> to vector<1x128xf32>
    %30 = vector.shape_cast %27 : vector<1x128xf32> to vector<1x1x128xf32>
    tpu.vector_store %arg6[%c0_34, %c0_35, %c0_36], %30 {strides = array<i32>} : memref<1x1x128xf32, #tpu.memory_space<vmem>>, vector<1x1x128xf32>,
    %31 = arith.mulf %22, %22 : vector<16x128xf32>
    %cst_37 = arith.constant dense<0.000000e+00> : vector<128xf32>
    %32 = vector.multi_reduction <add>, %31, %cst_37 [0] : vector<16x128xf32> to vector<128xf32>
    %33 = vector.shape_cast %32 : vector<128xf32> to vector<1x128xf32>
    %c0_38 = arith.constant 0 : index
    %c0_39 = arith.constant 0 : index
    %c0_40 = arith.constant 0 : index
    %34 = vector.load %arg7[%c0_38, %c0_39, %c0_40] : memref<1x1x128xf32, #tpu.memory_space<vmem>>, vector<1x1x128xf32>
    %35 = vector.shape_cast %34 : vector<1x1x128xf32> to vector<1x128xf32>
    %36 = vector.shape_cast %33 : vector<1x128xf32> to vector<1x1x128xf32>
    tpu.vector_store %arg7[%c0_38, %c0_39, %c0_40], %36 {strides = array<i32>} : memref<1x1x128xf32, #tpu.memory_space<vmem>>, vector<1x1x128xf32>,
    return
  }
  func.func @transform_0(%arg0: i32) -> (i32, i32, i32) {
    %c0_i32 = arith.constant 0 : i32
    %c0_i32_0 = arith.constant 0 : i32
    %c0_i32_1 = arith.constant 0 : i32
    return %arg0, %c0_i32, %c0_i32_0 : i32, i32, i32
  }
  func.func @transform_1(%arg0: i32) -> (i32, i32) {
    %c0_i32 = arith.constant 0 : i32
    %c0_i32_0 = arith.constant 0 : i32
    %c0_i32_1 = arith.constant 0 : i32
    return %c0_i32, %c0_i32_0 : i32, i32
  }
  func.func @transform_2(%arg0: i32) -> (i32, i32) {
    %c0_i32 = arith.constant 0 : i32
    %c0_i32_0 = arith.constant 0 : i32
    %c0_i32_1 = arith.constant 0 : i32
    return %c0_i32, %c0_i32_0 : i32, i32
  }
  func.func @transform_3(%arg0: i32) -> (i32, i32) {
    %c0_i32 = arith.constant 0 : i32
    %c0_i32_0 = arith.constant 0 : i32
    %c0_i32_1 = arith.constant 0 : i32
    return %c0_i32, %c0_i32_0 : i32, i32
  }
  func.func @transform_4(%arg0: i32) -> (i32, i32, i32) {
    %c0_i32 = arith.constant 0 : i32
    %c0_i32_0 = arith.constant 0 : i32
    %c0_i32_1 = arith.constant 0 : i32
    return %arg0, %c0_i32, %c0_i32_0 : i32, i32, i32
  }
  func.func @transform_5(%arg0: i32) -> (i32, i32, i32) {
    %c0_i32 = arith.constant 0 : i32
    %c0_i32_0 = arith.constant 0 : i32
    %c0_i32_1 = arith.constant 0 : i32
    return %arg0, %c0_i32, %c0_i32_0 : i32, i32, i32
  }
  func.func @transform_6(%arg0: i32) -> (i32, i32, i32) {
    %c0_i32 = arith.constant 0 : i32
    %c0_i32_0 = arith.constant 0 : i32
    %c0_i32_1 = arith.constant 0 : i32
    return %arg0, %c0_i32, %c0_i32_0 : i32, i32, i32
  }
}

module attributes {stable_mosaic.version = 11 : i64} {
  func.func @_conv_stats_kernel(%arg0: i32, %arg1: memref<1x16x128xf32, #tpu.memory_space<vmem>>, %arg2: memref<1152x128xf32, #tpu.memory_space<vmem>>, %arg3: memref<1x128xf32, #tpu.memory_space<vmem>>, %arg4: memref<1x128xf32, #tpu.memory_space<vmem>>, %arg5: memref<1x16x128xf32, #tpu.memory_space<vmem>>, %arg6: memref<1x1x128xf32, #tpu.memory_space<vmem>>, %arg7: memref<1x1x128xf32, #tpu.memory_space<vmem>>, %arg8: memref<18x144xf32, #tpu.memory_space<vmem>>) attributes {dimension_semantics = [#tpu.dimension_semantics<parallel>], iteration_bounds = array<i64: 2>, scalar_prefetch = 0 : i64, scratch_operands = 1 : i64, tpu.core_type = #tpu.core_type<tc>, window_params = [{transform_indices = @transform_0, window_bounds = array<i64: 1, 16, 128>}, {pipeline_mode = #tpu.pipeline_mode<synchronous>, transform_indices = @transform_1, window_bounds = array<i64: 1152, 128>}, {pipeline_mode = #tpu.pipeline_mode<synchronous>, transform_indices = @transform_2, window_bounds = array<i64: 1, 128>}, {pipeline_mode = #tpu.pipeline_mode<synchronous>, transform_indices = @transform_3, window_bounds = array<i64: 1, 128>}, {transform_indices = @transform_4, window_bounds = array<i64: 1, 16, 128>}, {transform_indices = @transform_5, window_bounds = array<i64: 1, 1, 128>}, {transform_indices = @transform_6, window_bounds = array<i64: 1, 1, 128>}]} {
    %c0 = arith.constant 0 : index
    %c0_0 = arith.constant 0 : index
    %c0_1 = arith.constant 0 : index
    %0 = vector.load %arg1[%c0, %c0_0, %c0_1] : memref<1x16x128xf32, #tpu.memory_space<vmem>>, vector<1x16x128xf32>
    %1 = vector.shape_cast %0 : vector<1x16x128xf32> to vector<16x128xf32>
    %c0_2 = arith.constant 0 : index
    %c0_3 = arith.constant 0 : index
    %2 = vector.load %arg3[%c0_2, %c0_3] : memref<1x128xf32, #tpu.memory_space<vmem>>, vector<1x128xf32>
    %3 = vector.broadcast %2 : vector<1x128xf32> to vector<16x128xf32>
    %4 = arith.mulf %1, %3 : vector<16x128xf32>
    %c0_4 = arith.constant 0 : index
    %c0_5 = arith.constant 0 : index
    %5 = vector.load %arg4[%c0_4, %c0_5] : memref<1x128xf32, #tpu.memory_space<vmem>>, vector<1x128xf32>
    %6 = vector.broadcast %5 : vector<1x128xf32> to vector<16x128xf32>
    %7 = arith.addf %4, %6 : vector<16x128xf32>
    %cst = arith.constant 0.000000e+00 : f32
    %8 = vector.broadcast %cst : f32 to vector<16x128xf32>
    %9 = arith.maximumf %7, %8 : vector<16x128xf32>
    %cst_6 = arith.constant 0.000000e+00 : f32
    %10 = vector.broadcast %cst_6 : f32 to vector<1x144xf32>
    %c0_7 = arith.constant 0 : index
    %c0_8 = arith.constant 0 : index
    %11 = vector.load %arg8[%c0_7, %c0_8] : memref<18x144xf32, #tpu.memory_space<vmem>>, vector<1x144xf32>
    tpu.vector_store %arg8[%c0_7, %c0_8], %10 {strides = array<i32>} : memref<18x144xf32, #tpu.memory_space<vmem>>, vector<1x144xf32>,
    %cst_9 = arith.constant 0.000000e+00 : f32
    %12 = vector.broadcast %cst_9 : f32 to vector<1x144xf32>
    %c17 = arith.constant 17 : index
    %c0_10 = arith.constant 0 : index
    %13 = vector.load %arg8[%c17, %c0_10] : memref<18x144xf32, #tpu.memory_space<vmem>>, vector<1x144xf32>
    tpu.vector_store %arg8[%c17, %c0_10], %12 {strides = array<i32>} : memref<18x144xf32, #tpu.memory_space<vmem>>, vector<1x144xf32>,
    %cst_11 = arith.constant 0.000000e+00 : f32
    %14 = vector.broadcast %cst_11 : f32 to vector<18x8xf32>
    %c0_12 = arith.constant 0 : index
    %c0_13 = arith.constant 0 : index
    %15 = vector.load %arg8[%c0_12, %c0_13] : memref<18x144xf32, #tpu.memory_space<vmem>>, vector<18x8xf32>
    tpu.vector_store %arg8[%c0_12, %c0_13], %14 {strides = array<i32>} : memref<18x144xf32, #tpu.memory_space<vmem>>, vector<18x8xf32>,
    %cst_14 = arith.constant 0.000000e+00 : f32
    %16 = vector.broadcast %cst_14 : f32 to vector<18x8xf32>
    %c0_15 = arith.constant 0 : index
    %c136 = arith.constant 136 : index
    %17 = vector.load %arg8[%c0_15, %c136] : memref<18x144xf32, #tpu.memory_space<vmem>>, vector<18x8xf32>
    tpu.vector_store %arg8[%c0_15, %c136], %16 {strides = array<i32>} : memref<18x144xf32, #tpu.memory_space<vmem>>, vector<18x8xf32>,
    %c1 = arith.constant 1 : index
    %c8 = arith.constant 8 : index
    %18 = vector.load %arg8[%c1, %c8] : memref<18x144xf32, #tpu.memory_space<vmem>>, vector<16x128xf32>
    tpu.vector_store %arg8[%c1, %c8], %9 {strides = array<i32>} : memref<18x144xf32, #tpu.memory_space<vmem>>, vector<16x128xf32>,
    %c0_16 = arith.constant 0 : index
    %c0_17 = arith.constant 0 : index
    %19 = vector.load %arg8[%c0_16, %c0_17] : memref<18x144xf32, #tpu.memory_space<vmem>>, vector<16x128xf32>
    %c0_18 = arith.constant 0 : index
    %c8_19 = arith.constant 8 : index
    %20 = vector.load %arg8[%c0_18, %c8_19] : memref<18x144xf32, #tpu.memory_space<vmem>>, vector<16x128xf32>
    %c0_20 = arith.constant 0 : index
    %c16 = arith.constant 16 : index
    %21 = vector.load %arg8[%c0_20, %c16] : memref<18x144xf32, #tpu.memory_space<vmem>>, vector<16x128xf32>
    %c1_21 = arith.constant 1 : index
    %c0_22 = arith.constant 0 : index
    %22 = vector.load %arg8[%c1_21, %c0_22] : memref<18x144xf32, #tpu.memory_space<vmem>>, vector<16x128xf32>
    %c1_23 = arith.constant 1 : index
    %c8_24 = arith.constant 8 : index
    %23 = vector.load %arg8[%c1_23, %c8_24] : memref<18x144xf32, #tpu.memory_space<vmem>>, vector<16x128xf32>
    %c1_25 = arith.constant 1 : index
    %c16_26 = arith.constant 16 : index
    %24 = vector.load %arg8[%c1_25, %c16_26] : memref<18x144xf32, #tpu.memory_space<vmem>>, vector<16x128xf32>
    %c2 = arith.constant 2 : index
    %c0_27 = arith.constant 0 : index
    %25 = vector.load %arg8[%c2, %c0_27] : memref<18x144xf32, #tpu.memory_space<vmem>>, vector<16x128xf32>
    %c2_28 = arith.constant 2 : index
    %c8_29 = arith.constant 8 : index
    %26 = vector.load %arg8[%c2_28, %c8_29] : memref<18x144xf32, #tpu.memory_space<vmem>>, vector<16x128xf32>
    %c2_30 = arith.constant 2 : index
    %c16_31 = arith.constant 16 : index
    %27 = vector.load %arg8[%c2_30, %c16_31] : memref<18x144xf32, #tpu.memory_space<vmem>>, vector<16x128xf32>
    %28 = tpu.concatenate %19, %20, %21, %22, %23, %24, %25, %26, %27 in 1 : vector<16x128xf32>, vector<16x128xf32>, vector<16x128xf32>, vector<16x128xf32>, vector<16x128xf32>, vector<16x128xf32>, vector<16x128xf32>, vector<16x128xf32>, vector<16x128xf32> -> vector<16x1152xf32>
    %c0_32 = arith.constant 0 : index
    %c0_33 = arith.constant 0 : index
    %29 = vector.load %arg2[%c0_32, %c0_33] : memref<1152x128xf32, #tpu.memory_space<vmem>>, vector<1152x128xf32>
    %cst_34 = arith.constant dense<0.000000e+00> : vector<16x128xf32>
    %30 = tpu.matmul %28, %29, %cst_34 {dimension_numbers = #tpu.dot_dimension_numbers<[1], [0], [0], [1], [0, 0, 1, 1], [], []>} : vector<16x1152xf32>, vector<1152x128xf32>, vector<16x128xf32> -> vector<16x128xf32>
    %c0_35 = arith.constant 0 : index
    %c0_36 = arith.constant 0 : index
    %c0_37 = arith.constant 0 : index
    %31 = vector.load %arg5[%c0_35, %c0_36, %c0_37] : memref<1x16x128xf32, #tpu.memory_space<vmem>>, vector<1x16x128xf32>
    %32 = vector.shape_cast %31 : vector<1x16x128xf32> to vector<16x128xf32>
    %33 = vector.shape_cast %30 : vector<16x128xf32> to vector<1x16x128xf32>
    tpu.vector_store %arg5[%c0_35, %c0_36, %c0_37], %33 {strides = array<i32>} : memref<1x16x128xf32, #tpu.memory_space<vmem>>, vector<1x16x128xf32>,
    %cst_38 = arith.constant dense<0.000000e+00> : vector<128xf32>
    %34 = vector.multi_reduction <add>, %30, %cst_38 [0] : vector<16x128xf32> to vector<128xf32>
    %35 = vector.shape_cast %34 : vector<128xf32> to vector<1x128xf32>
    %c0_39 = arith.constant 0 : index
    %c0_40 = arith.constant 0 : index
    %c0_41 = arith.constant 0 : index
    %36 = vector.load %arg6[%c0_39, %c0_40, %c0_41] : memref<1x1x128xf32, #tpu.memory_space<vmem>>, vector<1x1x128xf32>
    %37 = vector.shape_cast %36 : vector<1x1x128xf32> to vector<1x128xf32>
    %38 = vector.shape_cast %35 : vector<1x128xf32> to vector<1x1x128xf32>
    tpu.vector_store %arg6[%c0_39, %c0_40, %c0_41], %38 {strides = array<i32>} : memref<1x1x128xf32, #tpu.memory_space<vmem>>, vector<1x1x128xf32>,
    %39 = arith.mulf %30, %30 : vector<16x128xf32>
    %cst_42 = arith.constant dense<0.000000e+00> : vector<128xf32>
    %40 = vector.multi_reduction <add>, %39, %cst_42 [0] : vector<16x128xf32> to vector<128xf32>
    %41 = vector.shape_cast %40 : vector<128xf32> to vector<1x128xf32>
    %c0_43 = arith.constant 0 : index
    %c0_44 = arith.constant 0 : index
    %c0_45 = arith.constant 0 : index
    %42 = vector.load %arg7[%c0_43, %c0_44, %c0_45] : memref<1x1x128xf32, #tpu.memory_space<vmem>>, vector<1x1x128xf32>
    %43 = vector.shape_cast %42 : vector<1x1x128xf32> to vector<1x128xf32>
    %44 = vector.shape_cast %41 : vector<1x128xf32> to vector<1x1x128xf32>
    tpu.vector_store %arg7[%c0_43, %c0_44, %c0_45], %44 {strides = array<i32>} : memref<1x1x128xf32, #tpu.memory_space<vmem>>, vector<1x1x128xf32>,
    return
  }
  func.func @transform_0(%arg0: i32) -> (i32, i32, i32) {
    %c0_i32 = arith.constant 0 : i32
    %c0_i32_0 = arith.constant 0 : i32
    %c0_i32_1 = arith.constant 0 : i32
    return %arg0, %c0_i32, %c0_i32_0 : i32, i32, i32
  }
  func.func @transform_1(%arg0: i32) -> (i32, i32) {
    %c0_i32 = arith.constant 0 : i32
    %c0_i32_0 = arith.constant 0 : i32
    %c0_i32_1 = arith.constant 0 : i32
    return %c0_i32, %c0_i32_0 : i32, i32
  }
  func.func @transform_2(%arg0: i32) -> (i32, i32) {
    %c0_i32 = arith.constant 0 : i32
    %c0_i32_0 = arith.constant 0 : i32
    %c0_i32_1 = arith.constant 0 : i32
    return %c0_i32, %c0_i32_0 : i32, i32
  }
  func.func @transform_3(%arg0: i32) -> (i32, i32) {
    %c0_i32 = arith.constant 0 : i32
    %c0_i32_0 = arith.constant 0 : i32
    %c0_i32_1 = arith.constant 0 : i32
    return %c0_i32, %c0_i32_0 : i32, i32
  }
  func.func @transform_4(%arg0: i32) -> (i32, i32, i32) {
    %c0_i32 = arith.constant 0 : i32
    %c0_i32_0 = arith.constant 0 : i32
    %c0_i32_1 = arith.constant 0 : i32
    return %arg0, %c0_i32, %c0_i32_0 : i32, i32, i32
  }
  func.func @transform_5(%arg0: i32) -> (i32, i32, i32) {
    %c0_i32 = arith.constant 0 : i32
    %c0_i32_0 = arith.constant 0 : i32
    %c0_i32_1 = arith.constant 0 : i32
    return %arg0, %c0_i32, %c0_i32_0 : i32, i32, i32
  }
  func.func @transform_6(%arg0: i32) -> (i32, i32, i32) {
    %c0_i32 = arith.constant 0 : i32
    %c0_i32_0 = arith.constant 0 : i32
    %c0_i32_1 = arith.constant 0 : i32
    return %arg0, %c0_i32, %c0_i32_0 : i32, i32, i32
  }
}

module attributes {stable_mosaic.version = 11 : i64} {
  func.func @_bn_add_relu_kernel(%arg0: i32, %arg1: memref<1x16x128xf32, #tpu.memory_space<vmem>>, %arg2: memref<1x16x128xf32, #tpu.memory_space<vmem>>, %arg3: memref<1x128xf32, #tpu.memory_space<vmem>>, %arg4: memref<1x128xf32, #tpu.memory_space<vmem>>, %arg5: memref<1x16x128xf32, #tpu.memory_space<vmem>>) attributes {dimension_semantics = [#tpu.dimension_semantics<parallel>], iteration_bounds = array<i64: 2>, scalar_prefetch = 0 : i64, scratch_operands = 0 : i64, tpu.core_type = #tpu.core_type<tc>, window_params = [{transform_indices = @transform_0, window_bounds = array<i64: 1, 16, 128>}, {transform_indices = @transform_1, window_bounds = array<i64: 1, 16, 128>}, {pipeline_mode = #tpu.pipeline_mode<synchronous>, transform_indices = @transform_2, window_bounds = array<i64: 1, 128>}, {pipeline_mode = #tpu.pipeline_mode<synchronous>, transform_indices = @transform_3, window_bounds = array<i64: 1, 128>}, {transform_indices = @transform_4, window_bounds = array<i64: 1, 16, 128>}]} {
    %c0 = arith.constant 0 : index
    %c0_0 = arith.constant 0 : index
    %c0_1 = arith.constant 0 : index
    %0 = vector.load %arg1[%c0, %c0_0, %c0_1] : memref<1x16x128xf32, #tpu.memory_space<vmem>>, vector<1x16x128xf32>
    %c0_2 = arith.constant 0 : index
    %c0_3 = arith.constant 0 : index
    %1 = vector.load %arg3[%c0_2, %c0_3] : memref<1x128xf32, #tpu.memory_space<vmem>>, vector<1x128xf32>
    %2 = vector.shape_cast %1 : vector<1x128xf32> to vector<1x1x128xf32>
    %3 = vector.broadcast %2 : vector<1x1x128xf32> to vector<1x16x128xf32>
    %4 = arith.mulf %0, %3 : vector<1x16x128xf32>
    %c0_4 = arith.constant 0 : index
    %c0_5 = arith.constant 0 : index
    %5 = vector.load %arg4[%c0_4, %c0_5] : memref<1x128xf32, #tpu.memory_space<vmem>>, vector<1x128xf32>
    %6 = vector.shape_cast %5 : vector<1x128xf32> to vector<1x1x128xf32>
    %7 = vector.broadcast %6 : vector<1x1x128xf32> to vector<1x16x128xf32>
    %8 = arith.addf %4, %7 : vector<1x16x128xf32>
    %c0_6 = arith.constant 0 : index
    %c0_7 = arith.constant 0 : index
    %c0_8 = arith.constant 0 : index
    %9 = vector.load %arg2[%c0_6, %c0_7, %c0_8] : memref<1x16x128xf32, #tpu.memory_space<vmem>>, vector<1x16x128xf32>
    %10 = arith.addf %8, %9 : vector<1x16x128xf32>
    %cst = arith.constant 0.000000e+00 : f32
    %11 = vector.broadcast %cst : f32 to vector<1x16x128xf32>
    %12 = arith.maximumf %10, %11 : vector<1x16x128xf32>
    %c0_9 = arith.constant 0 : index
    %c0_10 = arith.constant 0 : index
    %c0_11 = arith.constant 0 : index
    %13 = vector.load %arg5[%c0_9, %c0_10, %c0_11] : memref<1x16x128xf32, #tpu.memory_space<vmem>>, vector<1x16x128xf32>
    tpu.vector_store %arg5[%c0_9, %c0_10, %c0_11], %12 {strides = array<i32>} : memref<1x16x128xf32, #tpu.memory_space<vmem>>, vector<1x16x128xf32>,
    return
  }
  func.func @transform_0(%arg0: i32) -> (i32, i32, i32) {
    %c0_i32 = arith.constant 0 : i32
    %c0_i32_0 = arith.constant 0 : i32
    %c0_i32_1 = arith.constant 0 : i32
    return %arg0, %c0_i32, %c0_i32_0 : i32, i32, i32
  }
  func.func @transform_1(%arg0: i32) -> (i32, i32, i32) {
    %c0_i32 = arith.constant 0 : i32
    %c0_i32_0 = arith.constant 0 : i32
    %c0_i32_1 = arith.constant 0 : i32
    return %arg0, %c0_i32, %c0_i32_0 : i32, i32, i32
  }
  func.func @transform_2(%arg0: i32) -> (i32, i32) {
    %c0_i32 = arith.constant 0 : i32
    %c0_i32_0 = arith.constant 0 : i32
    %c0_i32_1 = arith.constant 0 : i32
    return %c0_i32, %c0_i32_0 : i32, i32
  }
  func.func @transform_3(%arg0: i32) -> (i32, i32) {
    %c0_i32 = arith.constant 0 : i32
    %c0_i32_0 = arith.constant 0 : i32
    %c0_i32_1 = arith.constant 0 : i32
    return %c0_i32, %c0_i32_0 : i32, i32
  }
  func.func @transform_4(%arg0: i32) -> (i32, i32, i32) {
    %c0_i32 = arith.constant 0 : i32
    %c0_i32_0 = arith.constant 0 : i32
    %c0_i32_1 = arith.constant 0 : i32
    return %arg0, %c0_i32, %c0_i32_0 : i32, i32, i32
  }
}

</mosaic_0001>

<llo_original>
// kernel: tile.23
$region0: #{tile.23}
  #allocation0 [shape = 's32[1]{0}', space=sflag, size = 0x4, scoped, tag = 'scoped memory for tile.23']
  %s0 = inlined_call_operand.vmem [shape: f32[8], index: 0, kind: input, shape index: {}]
  %s1 = inlined_call_operand.vmem [shape: f32[16,8], index: 1, kind: output, shape index: {}]
  // Predicated region
  $region2: #{tile.23} parent=0 // pred_check
    _
  $region3: #{tile.23} parent=0 // pred_check_branch
    %3 = sbr.rel (0) target = $region5
  $region4: #{tile.23} parent=0 // pred_region
    _
  $region5: #{tile.23} parent=0 // pred_fallthru
    _
  %v4 = vld [vmem:[%s0] ss:$0 sm:$0xff]
  %5 = vst [vmem:[%s1] sm:$0xff] %v4
  %s6 = scalar_lea.vmem %s1, 8
  %7 = vst [vmem:[%s6] sm:$0xff] %v4

// kernel: tile.24
$region0: #{tile.24}
  %s0 = inlined_call_operand.vmem [shape: f32[16,8], index: 0, kind: input, shape index: {}]
  %s1 = inlined_call_operand.vmem [shape: f32[1,128], index: 1, kind: output, shape index: {}]
  $region1: #{tile.24} parent=0
    #allocation0 [shape = 'u8[4096]{0}', space=vmem, size = 0x1000, scoped, tag = 'scoped mem for output reshape']
    %v2 = vld [vmem:[%s0] sm:$0x1]
    %vm3 = vcmask 64512
    %4 = vst.msk [vmem:[#allocation0] sm:$0x1] %vm3, %v2
    %s5 = scalar_lea.vmem %s0, 15
    %v6 = vld [vmem:[%s5] sm:$0x1]
    %7 = vrot.lane.b32.xlu0 %v6, 120
    %v8 = vpop.permute.xlu0 %7
    %vm9 = vcmask 1048512
    %10 = vst.msk [vmem:[#allocation0] sm:$0x1] %vm9, %v8
    %s11 = scalar_lea.vmem %s0, 14
    %v12 = vld [vmem:[%s11] sm:$0x1]
    %13 = vrot.lane.b32.xlu0 %v12, 112
    %v14 = vpop.permute.xlu0 %13
    %vm15 = vcmask 982912
    %16 = vst.msk [vmem:[#allocation0] sm:$0x1] %vm15, %v14
    %s17 = scalar_lea.vmem %s0, 13
    %v18 = vld [vmem:[%s17] sm:$0x1]
    %19 = vrot.lane.b32.xlu0 %v18, 104
    %v20 = vpop.permute.xlu0 %19
    %vm21 = vcmask 917312
    %22 = vst.msk [vmem:[#allocation0] sm:$0x1] %vm21, %v20
    %s23 = scalar_lea.vmem %s0, 12
    %v24 = vld [vmem:[%s23] sm:$0x1]
    %25 = vrot.lane.b32.xlu0 %v24, 96
    %v26 = vpop.permute.xlu0 %25
    %vm27 = vcmask 851712
    %28 = vst.msk [vmem:[#allocation0] sm:$0x1] %vm27, %v26
    %s29 = scalar_lea.vmem %s0, 11
    %v30 = vld [vmem:[%s29] sm:$0x1]
    %31 = vrot.lane.b32.xlu0 %v30, 88
    %v32 = vpop.permute.xlu0 %31
    %vm33 = vcmask 786112
    %34 = vst.msk [vmem:[#allocation0] sm:$0x1] %vm33, %v32
    %s35 = scalar_lea.vmem %s0, 10
    %v36 = vld [vmem:[%s35] sm:$0x1]
    %37 = vrot.lane.b32.xlu0 %v36, 80
    %v38 = vpop.permute.xlu0 %37
    %vm39 = vcmask 720512
    %40 = vst.msk [vmem:[#allocation0] sm:$0x1] %vm39, %v38
    %s41 = scalar_lea.vmem %s0, 9
    %v42 = vld [vmem:[%s41] sm:$0x1]
    %43 = vrot.lane.b32.xlu0 %v42, 72
    %v44 = vpop.permute.xlu0 %43
    %vm45 = vcmask 654912
    %46 = vst.msk [vmem:[#allocation0] sm:$0x1] %vm45, %v44
    %s47 = scalar_lea.vmem %s0, 8
    %v48 = vld [vmem:[%s47] sm:$0x1]
    %49 = vrot.lane.b32.xlu0 %v48, 64
    %v50 = vpop.permute.xlu0 %49
    %vm51 = vcmask 589312
    %52 = vst.msk [vmem:[#allocation0] sm:$0x1] %vm51, %v50
    %s53 = scalar_lea.vmem %s0, 7
    %v54 = vld [vmem:[%s53] sm:$0x1]
    %55 = vrot.lane.b32.xlu0 %v54, 56
    %v56 = vpop.permute.xlu0 %55
    %vm57 = vcmask 523712
    %58 = vst.msk [vmem:[#allocation0] sm:$0x1] %vm57, %v56
    %s59 = scalar_lea.vmem %s0, 6
    %v60 = vld [vmem:[%s59] sm:$0x1]
    %61 = vrot.lane.b32.xlu0 %v60, 48
    %v62 = vpop.permute.xlu0 %61
    %vm63 = vcmask 458112
    %64 = vst.msk [vmem:[#allocation0] sm:$0x1] %vm63, %v62
    %s65 = scalar_lea.vmem %s0, 5
    %v66 = vld [vmem:[%s65] sm:$0x1]
    %67 = vrot.lane.b32.xlu0 %v66, 40
    %v68 = vpop.permute.xlu0 %67
    %vm69 = vcmask 392512
    %70 = vst.msk [vmem:[#allocation0] sm:$0x1] %vm69, %v68
    %s71 = scalar_lea.vmem %s0, 4
    %v72 = vld [vmem:[%s71] sm:$0x1]
    %73 = vrot.lane.b32.xlu0 %v72, 32
    %v74 = vpop.permute.xlu0 %73
    %vm75 = vcmask 326912
    %76 = vst.msk [vmem:[#allocation0] sm:$0x1] %vm75, %v74
    %s77 = scalar_lea.vmem %s0, 3
    %v78 = vld [vmem:[%s77] sm:$0x1]
    %79 = vrot.lane.b32.xlu0 %v78, 24
    %v80 = vpop.permute.xlu0 %79
    %vm81 = vcmask 261312
    %82 = vst.msk [vmem:[#allocation0] sm:$0x1] %vm81, %v80
    %s83 = scalar_lea.vmem %s0, 2
    %v84 = vld [vmem:[%s83] sm:$0x1]
    %85 = vrot.lane.b32.xlu0 %v84, 16
    %v86 = vpop.permute.xlu0 %85
    %vm87 = vcmask 195712
    %88 = vst.msk [vmem:[#allocation0] sm:$0x1] %vm87, %v86
    %s89 = scalar_lea.vmem %s0, 1
    %v90 = vld [vmem:[%s89] sm:$0x1]
    %91 = vrot.lane.b32.xlu0 %v90, 8
    %v92 = vpop.permute.xlu0 %91
    %vm93 = vcmask 130112
    %94 = vst.msk [vmem:[#allocation0] sm:$0x1] %vm93, %v92
    %s96 = ssub.s32 2, 1
    %v97 = vld [vmem:[#allocation0] sm:%s96]
    %s99 = ssub.s32 2, 1
    %100 = vst [vmem:[%s1] sm:%s99] %v97

// kernel: residual_block_nchw.4
$region0: #{residual_block_nchw.4}
  #allocation0 [shape = 'u32[]', space=smem, size = 0x4, offset = 0x4, fixed_abs, tag = 'smem constant byte address 0x4 - core index']
  #allocation1 [shape = 'u32[72,128]{1,0:T(1,128)}', space=vmem, size = 0x9000, scoped, tag = 'internal scratch']
  #allocation2 [shape = 'f32[18,144]{1,0:T(8,128)}', space=vmem, size = 0x6000, scoped, tag = 'scratch operand']
  %s0 = inlined_call_operand.vmem [shape: f32[2,16,128], index: 0, kind: input, shape index: {}]
  %s1 = inlined_call_operand.vmem [shape: f32[1152,128], index: 1, kind: input, shape index: {}]
  %s2 = inlined_call_operand.vmem [shape: f32[1,128], index: 2, kind: input, shape index: {}]
  %s3 = inlined_call_operand.vmem [shape: f32[1,128], index: 3, kind: input, shape index: {}]
  %s4 = inlined_call_operand.vmem [shape: f32[2,16,128], index: 4, kind: output, shape index: {0}]
  %s5 = inlined_call_operand.vmem [shape: f32[2,1,128], index: 5, kind: output, shape index: {1}]
  %s6 = inlined_call_operand.vmem [shape: f32[2,1,128], index: 6, kind: output, shape index: {2}]
  %7 = xla_tuple %s4, %s5, %s6
  %s8 = sld [smem:[#allocation0]]
  $region65: #{residual_block_nchw.4} parent=0
    _
  %s10 = ssub.s32 1, %s8
  %s11 = scalar_select 0, %s10, %s8
  loop: start=0, step=1, limit=4
  $region2: #{residual_block_nchw.4} parent=0 // loop_pre_header
    _
  $region3: #{residual_block_nchw.4} parent=0 // loop_header
    %s13 = sphi 0, %s17
    %p14 = scmp.ge.s32.totalorder %s13, 4
    %s23 = sphi 0, %s25
    %s26 = sphi 0, %s23
    %s27 = sphi 0, %s26
    %s43 = sphi 0, %s27
    %s47 = sphi 0, %s47
    %s49 = sphi 0, %s47
    %s50 = sphi 0, %s49
    %s64 = sphi 0, %s50
    %s68 = sphi 0, %s68
    %s70 = sphi 0, %s68
    %s71 = sphi 0, %s70
    %s85 = sphi 0, %s71
    %s89 = sphi 0, %s89
    %s91 = sphi 0, %s89
    %s92 = sphi 0, %s91
    %s106 = sphi 0, %s92
    %s112 = sphi 0, %s114
    %s115 = sphi 0, %s112
    %s116 = sphi 0, %s115
    %s132 = sphi 0, %s116
    %s138 = sphi 0, %s140
    %s141 = sphi 0, %s138
    %s142 = sphi 0, %s141
    %s158 = sphi 0, %s142
    %s164 = sphi 0, %s166
    %s167 = sphi 0, %s164
    %s168 = sphi 0, %s167
    %s184 = sphi 0, %s168
  $region4: #{residual_block_nchw.4} parent=0 // loop_header_branch
    %16 = sbr.rel (%p14) target = $region8
  $region5: #{residual_block_nchw.4} parent=0 // loop_body
    %s18 = ssub.s32 %s13, 1
    %s19 = ssub.s32 %s13, 2
    %s20 = sadd.s32 %s13, 1
    %s21 = ssub.s32 %s13, %s20
    %p22 = scmp.eq.s32.totalorder %s21, 0
    %s24 = sadd.s32 %s23, 1
    %s25 = scalar_select %p22, %s23, %s24
    %p28 = pneg %p22
    %p29 = scmp.eq.s32.totalorder %s13, 1
    %p30 = por %p28, %p29
    %p31 = scmp.ne.s32.totalorder %s23, %s26
    %p32 = scmp.eq.s32.totalorder %s13, 0
    %p33 = por %p31, %p32
    %p34 = scmp.ne.s32.totalorder %s23, %s26
    %p35 = scmp.eq.s32.totalorder %s18, 1
    %p36 = por %p34, %p35
    %p37 = scmp.ne.s32.totalorder %s26, %s27
    %p38 = scmp.eq.s32.totalorder %s18, 0
    %p39 = por %p37, %p38
    %p40 = scmp.ne.s32.totalorder %s26, %s27
    %p41 = scmp.eq.s32.totalorder %s19, 1
    %p42 = por %p40, %p41
    %p44 = scmp.ne.s32.totalorder %s27, %s43
    %p45 = scmp.eq.s32.totalorder %s19, 0
    %p46 = por %p44, %p45
    %s48 = sadd.s32 %s47, 1
    %p51 = scmp.eq.s32.totalorder %s13, 1
    %p52 = scmp.ne.s32.totalorder %s47, %s49
    %p53 = scmp.eq.s32.totalorder %s13, 0
    %p54 = por %p52, %p53
    %p55 = scmp.ne.s32.totalorder %s47, %s49
    %p56 = scmp.eq.s32.totalorder %s18, 1
    %p57 = por %p55, %p56
    %p58 = scmp.ne.s32.totalorder %s49, %s50
    %p59 = scmp.eq.s32.totalorder %s18, 0
    %p60 = por %p58, %p59
    %p61 = scmp.ne.s32.totalorder %s49, %s50
    %p62 = scmp.eq.s32.totalorder %s19, 1
    %p63 = por %p61, %p62
    %p65 = scmp.ne.s32.totalorder %s50, %s64
    %p66 = scmp.eq.s32.totalorder %s19, 0
    %p67 = por %p65, %p66
    %s69 = sadd.s32 %s68, 1
    %p72 = scmp.eq.s32.totalorder %s13, 1
    %p73 = scmp.ne.s32.totalorder %s68, %s70
    %p74 = scmp.eq.s32.totalorder %s13, 0
    %p75 = por %p73, %p74
    %p76 = scmp.ne.s32.totalorder %s68, %s70
    %p77 = scmp.eq.s32.totalorder %s18, 1
    %p78 = por %p76, %p77
    %p79 = scmp.ne.s32.totalorder %s70, %s71
    %p80 = scmp.eq.s32.totalorder %s18, 0
    %p81 = por %p79, %p80
    %p82 = scmp.ne.s32.totalorder %s70, %s71
    %p83 = scmp.eq.s32.totalorder %s19, 1
    %p84 = por %p82, %p83
    %p86 = scmp.ne.s32.totalorder %s71, %s85
    %p87 = scmp.eq.s32.totalorder %s19, 0
    %p88 = por %p86, %p87
    %s90 = sadd.s32 %s89, 1
    %p93 = scmp.eq.s32.totalorder %s13, 1
    %p94 = scmp.ne.s32.totalorder %s89, %s91
    %p95 = scmp.eq.s32.totalorder %s13, 0
    %p96 = por %p94, %p95
    %p97 = scmp.ne.s32.totalorder %s89, %s91
    %p98 = scmp.eq.s32.totalorder %s18, 1
    %p99 = por %p97, %p98
    %p100 = scmp.ne.s32.totalorder %s91, %s92
    %p101 = scmp.eq.s32.totalorder %s18, 0
    %p102 = por %p100, %p101
    %p103 = scmp.ne.s32.totalorder %s91, %s92
    %p104 = scmp.eq.s32.totalorder %s19, 1
    %p105 = por %p103, %p104
    %p107 = scmp.ne.s32.totalorder %s92, %s106
    %p108 = scmp.eq.s32.totalorder %s19, 0
    %p109 = por %p107, %p108
    %s110 = ssub.s32 %s13, %s20
    %p111 = scmp.eq.s32.totalorder %s110, 0
    %s113 = sadd.s32 %s112, 1
    %s114 = scalar_select %p111, %s112, %s113
    %p117 = pneg %p111
    %p118 = scmp.eq.s32.totalorder %s13, 1
    %p119 = por %p117, %p118
    %p120 = scmp.ne.s32.totalorder %s112, %s115
    %p121 = scmp.eq.s32.totalorder %s13, 0
    %p122 = por %p120, %p121
    %p123 = scmp.ne.s32.totalorder %s112, %s115
    %p124 = scmp.eq.s32.totalorder %s18, 1
    %p125 = por %p123, %p124
    %p126 = scmp.ne.s32.totalorder %s115, %s116
    %p127 = scmp.eq.s32.totalorder %s18, 0
    %p128 = por %p126, %p127
    %p129 = scmp.ne.s32.totalorder %s115, %s116
    %p130 = scmp.eq.s32.totalorder %s19, 1
    %p131 = por %p129, %p130
    %p133 = scmp.ne.s32.totalorder %s116, %s132
    %p134 = scmp.eq.s32.totalorder %s19, 0
    %p135 = por %p133, %p134
    %s136 = ssub.s32 %s13, %s20
    %p137 = scmp.eq.s32.totalorder %s136, 0
    %s139 = sadd.s32 %s138, 1
    %s140 = scalar_select %p137, %s138, %s139
    %p143 = pneg %p137
    %p144 = scmp.eq.s32.totalorder %s13, 1
    %p145 = por %p143, %p144
    %p146 = scmp.ne.s32.totalorder %s138, %s141
    %p147 = scmp.eq.s32.totalorder %s13, 0
    %p148 = por %p146, %p147
    %p149 = scmp.ne.s32.totalorder %s138, %s141
    %p150 = scmp.eq.s32.totalorder %s18, 1
    %p151 = por %p149, %p150
    %p152 = scmp.ne.s32.totalorder %s141, %s142
    %p153 = scmp.eq.s32.totalorder %s18, 0
    %p154 = por %p152, %p153
    %p155 = scmp.ne.s32.totalorder %s141, %s142
    %p156 = scmp.eq.s32.totalorder %s19, 1
    %p157 = por %p155, %p156
    %p159 = scmp.ne.s32.totalorder %s142, %s158
    %p160 = scmp.eq.s32.totalorder %s19, 0
    %p161 = por %p159, %p160
    %s162 = ssub.s32 %s13, %s20
    %p163 = scmp.eq.s32.totalorder %s162, 0
    %s165 = sadd.s32 %s164, 1
    %s166 = scalar_select %p163, %s164, %s165
    %p169 = pneg %p163
    %p170 = scmp.eq.s32.totalorder %s13, 1
    %p171 = por %p169, %p170
    %p172 = scmp.ne.s32.totalorder %s164, %s167
    %p173 = scmp.eq.s32.totalorder %s13, 0
    %p174 = por %p172, %p173
    %p175 = scmp.ne.s32.totalorder %s164, %s167
    %p176 = scmp.eq.s32.totalorder %s18, 1
    %p177 = por %p175, %p176
    %p178 = scmp.ne.s32.totalorder %s167, %s168
    %p179 = scmp.eq.s32.totalorder %s18, 0
    %p180 = por %p178, %p179
    %p181 = scmp.ne.s32.totalorder %s167, %s168
    %p182 = scmp.eq.s32.totalorder %s19, 1
    %p183 = por %p181, %p182
    %p185 = scmp.ne.s32.totalorder %s168, %s184
    %p186 = scmp.eq.s32.totalorder %s19, 0
    %p187 = por %p185, %p186
    %p188 = scmp.le.s32.totalorder 1, %s13
    %p189 = scmp.lt.s32.totalorder %s13, 3
    %p190 = pnand %p188, %p189
    %p191 = pneg %p190
    // Predicated region
    $region9: #{residual_block_nchw.4} parent=5 // pred_check
      _
    $region10: #{residual_block_nchw.4} parent=5 // pred_check_branch
      %193 = sbr.rel (%p190) target = $region12
    $region11: #{residual_block_nchw.4} parent=5 // pred_region
      %s194 = ssub.s32 %s13, 1
      // Predicated region
      $region13: #{residual_block_nchw.4} parent=11 // pred_check
        %p195 = pneg %p60
      $region14: #{residual_block_nchw.4} parent=11 // pred_check_branch
        %197 = sbr.rel (%p195) target = $region16
      $region15: #{residual_block_nchw.4} parent=11 // pred_region
        _
      $region16: #{residual_block_nchw.4} parent=11 // pred_fallthru
        _
      // Predicated region
      $region17: #{residual_block_nchw.4} parent=11 // pred_check
        %p198 = pneg %p81
      $region18: #{residual_block_nchw.4} parent=11 // pred_check_branch
        %200 = sbr.rel (%p198) target = $region20
      $region19: #{residual_block_nchw.4} parent=11 // pred_region
        _
      $region20: #{residual_block_nchw.4} parent=11 // pred_fallthru
        _
      // Predicated region
      $region21: #{residual_block_nchw.4} parent=11 // pred_check
        %p201 = pneg %p102
      $region22: #{residual_block_nchw.4} parent=11 // pred_check_branch
        %203 = sbr.rel (%p201) target = $region24
      $region23: #{residual_block_nchw.4} parent=11 // pred_region
        _
      $region24: #{residual_block_nchw.4} parent=11 // pred_fallthru
        _
    $region12: #{residual_block_nchw.4} parent=5 // pred_fallthru
      _
    %p204 = scmp.lt.s32.totalorder %s13, 2
    // Predicated region
    $region25: #{residual_block_nchw.4} parent=5 // pred_check
      %p205 = pneg %p204
    $region26: #{residual_block_nchw.4} parent=5 // pred_check_branch
      %207 = sbr.rel (%p205) target = $region28
    $region27: #{residual_block_nchw.4} parent=5 // pred_region
      // Predicated region
      $region29: #{residual_block_nchw.4} parent=27 // pred_check
        %p208 = pneg %p33
      $region30: #{residual_block_nchw.4} parent=27 // pred_check_branch
        %210 = sbr.rel (%p208) target = $region32
      $region31: #{residual_block_nchw.4} parent=27 // pred_region
        %p211 = scmp.lt.s32.totalorder %s13, 1
        %s212 = scalar_select %p211, %s13, 1
        %s213 = smul.addr %s212, 2
        %s214 = smul.addr %s213, 8
        %s215 = scalar_lea.vmem %s0, %s214
      $region32: #{residual_block_nchw.4} parent=27 // pred_fallthru
        _
    $region28: #{residual_block_nchw.4} parent=5 // pred_fallthru
      _
    %p216 = scmp.le.s32.totalorder 1, %s13
    %p217 = scmp.lt.s32.totalorder %s13, 3
    %p218 = pnand %p216, %p217
    %p219 = pneg %p218
    // Predicated region
    $region33: #{residual_block_nchw.4} parent=5 // pred_check
      _
    $region34: #{residual_block_nchw.4} parent=5 // pred_check_branch
      %221 = sbr.rel (%p218) target = $region36
    $region35: #{residual_block_nchw.4} parent=5 // pred_region
      %s222 = ssub.s32 %s13, 1
      %p223 = scmp.lt.s32.totalorder %s18, 1
      %s224 = scalar_select %p223, %s18, 1
      %s225 = smul.addr %s224, 2
      %s226 = smul.addr %s225, 8
      %s227 = scalar_lea.vmem %s0, %s226
      %p228 = pneg %p39
      %p229 = pneg %p36
      %p230 = pneg %p60
      %p231 = pneg %p57
      %p232 = pneg %p81
      %p233 = pneg %p78
      %p234 = pneg %p102
      %p235 = pneg %p99
      %p236 = pneg %p128
      %p237 = pneg %p125
      %p238 = scmp.lt.s32.totalorder %s18, 1
      %s239 = scalar_select %p238, %s18, 1
      %s240 = smul.addr %s239, 2
      %s241 = smul.addr %s240, 8
      %s242 = scalar_lea.vmem %s4, %s241
      %p243 = pneg %p154
      %p244 = pneg %p151
      %p245 = scmp.lt.s32.totalorder %s18, 1
      %s246 = scalar_select %p245, %s18, 1
      %s247 = scalar_lea.vmem %s5, %s246
      %p248 = pneg %p180
      %p249 = pneg %p177
      %p250 = scmp.lt.s32.totalorder %s18, 1
      %s251 = scalar_select %p250, %s18, 1
      %s252 = scalar_lea.vmem %s6, %s251
      %p253 = scmp.lt.s32.totalorder %s18, 1
      %s254 = scalar_select %p253, %s18, 1
      %s255 = smul.addr %s254, 2
      %s256 = smul.addr %s255, 8
      %s257 = scalar_lea.vmem %s0, %s256
      %p258 = scmp.lt.s32.totalorder %s18, 1
      %s259 = scalar_select %p258, %s18, 1
      %s260 = smul.addr %s259, 2
      %s261 = smul.addr %s260, 8
      %s262 = scalar_lea.vmem %s4, %s261
      %p263 = scmp.lt.s32.totalorder %s18, 1
      %s264 = scalar_select %p263, %s18, 1
      %s265 = scalar_lea.vmem %s5, %s264
      %p266 = scmp.lt.s32.totalorder %s18, 1
      %s267 = scalar_select %p266, %s18, 1
      %s268 = scalar_lea.vmem %s6, %s267
      %v269 = vld [vmem:[%s257] sm:$0xff]
      %v270 = vld [vmem:[%s257 + $0x8] sm:$0xff]
      %v271 = vld [vmem:[%s2] sm:$0x1]
      %v273 = vperm.slane %v271, 0
      %v275 = vmul.f32 %v269, %v273
      %v276 = vmul.f32 %v270, %v273
      %v277 = vld [vmem:[%s3] sm:$0x1]
      %v279 = vperm.slane %v277, 0
      %v281 = vadd.f32 %v275, %v279
      %v282 = vadd.f32 %v276, %v279
      %v283 = vmax.f32 %v281, 0.0
      %v284 = vmax.f32 %v282, 0.0
      %v285 = vlaneseq
      %vm286 = vcmp.ge.s32.totalorder %v285, 0
      %vm287 = vcmp.lt.s32.totalorder %v285, 144
      %vm288 = vmand %vm286, %vm287
      %289 = vst.msk [vmem:[#allocation2] ss:$8 sm:$0x3] %vm288, 0.0
      %290 = vst.msk [vmem:[#allocation2] ss:$8 sm:$0x0] %vm288, 0.0
      %s291 = scalar_lea.vmem [#allocation2], 33
      %292 = vst.msk [vmem:[%s291] ss:$8 sm:$0x3] %vm288, 0.0
      %293 = vst.msk [vmem:[%s291] ss:$8 sm:$0x0] %vm288, 0.0
      %vm294 = vcmask 64512
      %295 = vst.msk [vmem:[#allocation2] sm:$0xff] %vm294, 0.0
      %296 = vst.msk [vmem:[#allocation2 + $0x10] sm:$0xff] %vm294, 0.0
      %vm297 = vcmask 58368
      %298 = vst.msk [vmem:[#allocation2 + $0x20] sm:$0x3] %vm297, 0.0
      %vm299 = vcmask 130112
      %300 = vst.msk [vmem:[#allocation2 + $0x8] sm:$0xff] %vm299, 0.0
      %301 = vst.msk [vmem:[#allocation2 + $0x18] sm:$0xff] %vm299, 0.0
      %vm302 = vcmask 123968
      %303 = vst.msk [vmem:[#allocation2 + $0x28] sm:$0x3] %vm302, 0.0
      %vm306 = vcmask 1040384
      %v307 = vrot.slane %v283, 7
      %v308 = vrot.slane %v284, 7
      %v309 = vsel %vm306, %v307, %v308
      %310 = vrot.lane.b32.xlu0 %v307, 8
      %v311 = vpop.permute.xlu0 %310
      %312 = vrot.lane.b32.xlu0 %v309, 8
      %v313 = vpop.permute.xlu0 %312
      %314 = vrot.lane.b32.xlu0 %v308, 8
      %v315 = vpop.permute.xlu0 %314
      %vm319 = vcmask 1047617
      %320 = vst.msk [vmem:[#allocation2] sm:$0xfe] %vm319, %v311
      %vm321 = vcmask 64513
      %322 = vst.msk [vmem:[#allocation2 + $0x8] sm:$0xfe] %vm321, %v311
      %vm323 = vcmask 1047616
      %324 = vst.msk [vmem:[#allocation2 + $0x10] sm:$0xff] %vm323, %v313
      %325 = vst.msk [vmem:[#allocation2 + $0x18] sm:$0xff] %vm294, %v313
      %vm326 = vcmask 1040448
      %327 = vst.msk [vmem:[#allocation2 + $0x20] sm:$0x1] %vm326, %v315
      %vm328 = vcmask 57344
      %329 = vst.msk [vmem:[#allocation2 + $0x28] sm:$0x1] %vm328, %v315
      %v330 = vld [vmem:[#allocation2] sm:$0xff]
      %v331 = vld [vmem:[#allocation2 + $0x10] sm:$0xff]
      %v332 = vld [vmem:[#allocation2 + $0x8] sm:$0xff]
      %v333 = vld [vmem:[#allocation2 + $0x18] sm:$0xff]
      %v334 = vld [vmem:[#allocation2] sm:$0xfe]
      %v335 = vld [vmem:[#allocation2 + $0x20] sm:$0x1]
      %v336 = vld [vmem:[#allocation2 + $0x8] sm:$0xfe]
      %v337 = vld [vmem:[#allocation2 + $0x28] sm:$0x1]
      %v338 = vld [vmem:[#allocation2] sm:$0xfc]
      %v339 = vld [vmem:[#allocation2 + $0x20] sm:$0x3]
      %v340 = vld [vmem:[#allocation2 + $0x8] sm:$0xfc]
      %v341 = vld [vmem:[#allocation2 + $0x28] sm:$0x3]
      %346 = vrot.lane.b32.xlu0 %v330, 120
      %v347 = vpop.permute.xlu0 %346
      %348 = vrot.lane.b32.xlu0 %v332, 120
      %v349 = vpop.permute.xlu0 %348
      %350 = vrot.lane.b32.xlu0 %v331, 120
      %v351 = vpop.permute.xlu0 %350
      %352 = vrot.lane.b32.xlu0 %v333, 120
      %v353 = vpop.permute.xlu0 %352
      %vm354 = vcmask 982016
      %v355 = vsel %vm354, %v347, %v349
      %v356 = vsel %vm354, %v351, %v353
      %359 = vrot.lane.b32.xlu0 %v330, 112
      %v360 = vpop.permute.xlu0 %359
      %361 = vrot.lane.b32.xlu0 %v332, 112
      %v362 = vpop.permute.xlu0 %361
      %363 = vrot.lane.b32.xlu0 %v331, 112
      %v364 = vpop.permute.xlu0 %363
      %365 = vrot.lane.b32.xlu0 %v333, 112
      %v366 = vpop.permute.xlu0 %365
      %vm367 = vcmask 916480
      %v368 = vsel %vm367, %v360, %v362
      %v369 = vsel %vm367, %v364, %v366
      %vm374 = vcmask 1046528
      %v375 = vrot.slane %v334, 1
      %v376 = vrot.slane %v331, 1
      %v377 = vsel %vm374, %v375, %v376
      %v378 = vrot.slane %v335, 1
      %v379 = vsel %vm374, %v376, %v378
      %v384 = vrot.slane %v336, 1
      %v385 = vrot.slane %v333, 1
      %v386 = vsel %vm374, %v384, %v385
      %v387 = vrot.slane %v337, 1
      %v388 = vsel %vm374, %v385, %v387
      %389 = vrot.lane.b32.xlu0 %v377, 120
      %v390 = vpop.permute.xlu0 %389
      %391 = vrot.lane.b32.xlu0 %v386, 120
      %v392 = vpop.permute.xlu0 %391
      %393 = vrot.lane.b32.xlu0 %v379, 120
      %v394 = vpop.permute.xlu0 %393
      %395 = vrot.lane.b32.xlu0 %v388, 120
      %v396 = vpop.permute.xlu0 %395
      %v397 = vsel %vm354, %v390, %v392
      %v398 = vsel %vm354, %v394, %v396
      %401 = vrot.lane.b32.xlu0 %v377, 112
      %v402 = vpop.permute.xlu0 %401
      %403 = vrot.lane.b32.xlu0 %v386, 112
      %v404 = vpop.permute.xlu0 %403
      %405 = vrot.lane.b32.xlu0 %v379, 112
      %v406 = vpop.permute.xlu0 %405
      %407 = vrot.lane.b32.xlu0 %v388, 112
      %v408 = vpop.permute.xlu0 %407
      %v409 = vsel %vm367, %v402, %v404
      %v410 = vsel %vm367, %v406, %v408
      %vm415 = vcmask 1045504
      %v416 = vrot.slane %v338, 2
      %v417 = vrot.slane %v331, 2
      %v418 = vsel %vm415, %v416, %v417
      %v419 = vrot.slane %v339, 2
      %v420 = vsel %vm415, %v417, %v419
      %v425 = vrot.slane %v340, 2
      %v426 = vrot.slane %v333, 2
      %v427 = vsel %vm415, %v425, %v426
      %v428 = vrot.slane %v341, 2
      %v429 = vsel %vm415, %v426, %v428
      %430 = vrot.lane.b32.xlu0 %v418, 120
      %v431 = vpop.permute.xlu0 %430
      %432 = vrot.lane.b32.xlu0 %v427, 120
      %v433 = vpop.permute.xlu0 %432
      %434 = vrot.lane.b32.xlu0 %v420, 120
      %v435 = vpop.permute.xlu0 %434
      %436 = vrot.lane.b32.xlu0 %v429, 120
      %v437 = vpop.permute.xlu0 %436
      %v438 = vsel %vm354, %v431, %v433
      %v439 = vsel %vm354, %v435, %v437
      %442 = vrot.lane.b32.xlu0 %v418, 112
      %v443 = vpop.permute.xlu0 %442
      %444 = vrot.lane.b32.xlu0 %v427, 112
      %v445 = vpop.permute.xlu0 %444
      %446 = vrot.lane.b32.xlu0 %v420, 112
      %v447 = vpop.permute.xlu0 %446
      %448 = vrot.lane.b32.xlu0 %v429, 112
      %v449 = vpop.permute.xlu0 %448
      %v450 = vsel %vm367, %v443, %v445
      %v451 = vsel %vm367, %v447, %v449
      %v454 = vld [vmem:[%s1] sm:$0xff]
      %v455 = vld [vmem:[%s1 + $0x8] sm:$0xff]
      %v456 = vld [vmem:[%s1 + $0x10] sm:$0xff]
      %v457 = vld [vmem:[%s1 + $0x18] sm:$0xff]
      %v458 = vld [vmem:[%s1 + $0x20] sm:$0xff]
      %v459 = vld [vmem:[%s1 + $0x28] sm:$0xff]
      %v460 = vld [vmem:[%s1 + $0x30] sm:$0xff]
      %v461 = vld [vmem:[%s1 + $0x38] sm:$0xff]
      %v462 = vld [vmem:[%s1 + $0x40] sm:$0xff]
      %v463 = vld [vmem:[%s1 + $0x48] sm:$0xff]
      %v464 = vld [vmem:[%s1 + $0x50] sm:$0xff]
      %v465 = vld [vmem:[%s1 + $0x58] sm:$0xff]
      %v466 = vld [vmem:[%s1 + $0x60] sm:$0xff]
      %v467 = vld [vmem:[%s1 + $0x68] sm:$0xff]
      %v468 = vld [vmem:[%s1 + $0x70] sm:$0xff]
      %v469 = vld [vmem:[%s1 + $0x78] sm:$0xff]
      %v470 = vld [vmem:[%s1 + $0x80] sm:$0xff]
      %v471 = vld [vmem:[%s1 + $0x88] sm:$0xff]
      %v472 = vld [vmem:[%s1 + $0x90] sm:$0xff]
      %v473 = vld [vmem:[%s1 + $0x98] sm:$0xff]
      %v474 = vld [vmem:[%s1 + $0xa0] sm:$0xff]
      %v475 = vld [vmem:[%s1 + $0xa8] sm:$0xff]
      %v476 = vld [vmem:[%s1 + $0xb0] sm:$0xff]
      %v477 = vld [vmem:[%s1 + $0xb8] sm:$0xff]
      %v478 = vld [vmem:[%s1 + $0xc0] sm:$0xff]
      %v479 = vld [vmem:[%s1 + $0xc8] sm:$0xff]
      %v480 = vld [vmem:[%s1 + $0xd0] sm:$0xff]
      %v481 = vld [vmem:[%s1 + $0xd8] sm:$0xff]
      %v482 = vld [vmem:[%s1 + $0xe0] sm:$0xff]
      %v483 = vld [vmem:[%s1 + $0xe8] sm:$0xff]
      %v484 = vld [vmem:[%s1 + $0xf0] sm:$0xff]
      %v485 = vld [vmem:[%s1 + $0xf8] sm:$0xff]
      %v486 = vld [vmem:[%s1 + $0x100] sm:$0xff]
      %v487 = vld [vmem:[%s1 + $0x108] sm:$0xff]
      %v488 = vld [vmem:[%s1 + $0x110] sm:$0xff]
      %v489 = vld [vmem:[%s1 + $0x118] sm:$0xff]
      %v490 = vld [vmem:[%s1 + $0x120] sm:$0xff]
      %v491 = vld [vmem:[%s1 + $0x128] sm:$0xff]
      %v492 = vld [vmem:[%s1 + $0x130] sm:$0xff]
      %v493 = vld [vmem:[%s1 + $0x138] sm:$0xff]
      %v494 = vld [vmem:[%s1 + $0x140] sm:$0xff]
      %v495 = vld [vmem:[%s1 + $0x148] sm:$0xff]
      %v496 = vld [vmem:[%s1 + $0x150] sm:$0xff]
      %v497 = vld [vmem:[%s1 + $0x158] sm:$0xff]
      %v498 = vld [vmem:[%s1 + $0x160] sm:$0xff]
      %v499 = vld [vmem:[%s1 + $0x168] sm:$0xff]
      %v500 = vld [vmem:[%s1 + $0x170] sm:$0xff]
      %v501 = vld [vmem:[%s1 + $0x178] sm:$0xff]
      %v502 = vld [vmem:[%s1 + $0x180] sm:$0xff]
      %v503 = vld [vmem:[%s1 + $0x188] sm:$0xff]
      %v504 = vld [vmem:[%s1 + $0x190] sm:$0xff]
      %v505 = vld [vmem:[%s1 + $0x198] sm:$0xff]
      %v506 = vld [vmem:[%s1 + $0x1a0] sm:$0xff]
      %v507 = vld [vmem:[%s1 + $0x1a8] sm:$0xff]
      %v508 = vld [vmem:[%s1 + $0x1b0] sm:$0xff]
      %v509 = vld [vmem:[%s1 + $0x1b8] sm:$0xff]
      %v510 = vld [vmem:[%s1 + $0x1c0] sm:$0xff]
      %v511 = vld [vmem:[%s1 + $0x1c8] sm:$0xff]
      %v512 = vld [vmem:[%s1 + $0x1d0] sm:$0xff]
      %v513 = vld [vmem:[%s1 + $0x1d8] sm:$0xff]
      %v514 = vld [vmem:[%s1 + $0x1e0] sm:$0xff]
      %v515 = vld [vmem:[%s1 + $0x1e8] sm:$0xff]
      %v516 = vld [vmem:[%s1 + $0x1f0] sm:$0xff]
      %v517 = vld [vmem:[%s1 + $0x1f8] sm:$0xff]
      %v518 = vld [vmem:[%s1 + $0x200] sm:$0xff]
      %v519 = vld [vmem:[%s1 + $0x208] sm:$0xff]
      %v520 = vld [vmem:[%s1 + $0x210] sm:$0xff]
      %v521 = vld [vmem:[%s1 + $0x218] sm:$0xff]
      %v522 = vld [vmem:[%s1 + $0x220] sm:$0xff]
      %v523 = vld [vmem:[%s1 + $0x228] sm:$0xff]
      %v524 = vld [vmem:[%s1 + $0x230] sm:$0xff]
      %v525 = vld [vmem:[%s1 + $0x238] sm:$0xff]
      %v526 = vld [vmem:[%s1 + $0x240] sm:$0xff]
      %v527 = vld [vmem:[%s1 + $0x248] sm:$0xff]
      %v528 = vld [vmem:[%s1 + $0x250] sm:$0xff]
      %v529 = vld [vmem:[%s1 + $0x258] sm:$0xff]
      %v530 = vld [vmem:[%s1 + $0x260] sm:$0xff]
      %v531 = vld [vmem:[%s1 + $0x268] sm:$0xff]
      %v532 = vld [vmem:[%s1 + $0x270] sm:$0xff]
      %v533 = vld [vmem:[%s1 + $0x278] sm:$0xff]
      %v534 = vld [vmem:[%s1 + $0x280] sm:$0xff]
      %v535 = vld [vmem:[%s1 + $0x288] sm:$0xff]
      %v536 = vld [vmem:[%s1 + $0x290] sm:$0xff]
      %v537 = vld [vmem:[%s1 + $0x298] sm:$0xff]
      %v538 = vld [vmem:[%s1 + $0x2a0] sm:$0xff]
      %v539 = vld [vmem:[%s1 + $0x2a8] sm:$0xff]
      %v540 = vld [vmem:[%s1 + $0x2b0] sm:$0xff]
      %v541 = vld [vmem:[%s1 + $0x2b8] sm:$0xff]
      %v542 = vld [vmem:[%s1 + $0x2c0] sm:$0xff]
      %v543 = vld [vmem:[%s1 + $0x2c8] sm:$0xff]
      %v544 = vld [vmem:[%s1 + $0x2d0] sm:$0xff]
      %v545 = vld [vmem:[%s1 + $0x2d8] sm:$0xff]
      %v546 = vld [vmem:[%s1 + $0x2e0] sm:$0xff]
      %v547 = vld [vmem:[%s1 + $0x2e8] sm:$0xff]
      %v548 = vld [vmem:[%s1 + $0x2f0] sm:$0xff]
      %v549 = vld [vmem:[%s1 + $0x2f8] sm:$0xff]
      %v550 = vld [vmem:[%s1 + $0x300] sm:$0xff]
      %v551 = vld [vmem:[%s1 + $0x308] sm:$0xff]
      %v552 = vld [vmem:[%s1 + $0x310] sm:$0xff]
      %v553 = vld [vmem:[%s1 + $0x318] sm:$0xff]
      %v554 = vld [vmem:[%s1 + $0x320] sm:$0xff]
      %v555 = vld [vmem:[%s1 + $0x328] sm:$0xff]
      %v556 = vld [vmem:[%s1 + $0x330] sm:$0xff]
      %v557 = vld [vmem:[%s1 + $0x338] sm:$0xff]
      %v558 = vld [vmem:[%s1 + $0x340] sm:$0xff]
      %v559 = vld [vmem:[%s1 + $0x348] sm:$0xff]
      %v560 = vld [vmem:[%s1 + $0x350] sm:$0xff]
      %v561 = vld [vmem:[%s1 + $0x358] sm:$0xff]
      %v562 = vld [vmem:[%s1 + $0x360] sm:$0xff]
      %v563 = vld [vmem:[%s1 + $0x368] sm:$0xff]
      %v564 = vld [vmem:[%s1 + $0x370] sm:$0xff]
      %v565 = vld [vmem:[%s1 + $0x378] sm:$0xff]
      %v566 = vld [vmem:[%s1 + $0x380] sm:$0xff]
      %v567 = vld [vmem:[%s1 + $0x388] sm:$0xff]
      %v568 = vld [vmem:[%s1 + $0x390] sm:$0xff]
      %v569 = vld [vmem:[%s1 + $0x398] sm:$0xff]
      %v570 = vld [vmem:[%s1 + $0x3a0] sm:$0xff]
      %v571 = vld [vmem:[%s1 + $0x3a8] sm:$0xff]
      %v572 = vld [vmem:[%s1 + $0x3b0] sm:$0xff]
      %v573 = vld [vmem:[%s1 + $0x3b8] sm:$0xff]
      %v574 = vld [vmem:[%s1 + $0x3c0] sm:$0xff]
      %v575 = vld [vmem:[%s1 + $0x3c8] sm:$0xff]
      %v576 = vld [vmem:[%s1 + $0x3d0] sm:$0xff]
      %v577 = vld [vmem:[%s1 + $0x3d8] sm:$0xff]
      %v578 = vld [vmem:[%s1 + $0x3e0] sm:$0xff]
      %v579 = vld [vmem:[%s1 + $0x3e8] sm:$0xff]
      %v580 = vld [vmem:[%s1 + $0x3f0] sm:$0xff]
      %v581 = vld [vmem:[%s1 + $0x3f8] sm:$0xff]
      %v582 = vld [vmem:[%s1 + $0x400] sm:$0xff]
      %v583 = vld [vmem:[%s1 + $0x408] sm:$0xff]
      %v584 = vld [vmem:[%s1 + $0x410] sm:$0xff]
      %v585 = vld [vmem:[%s1 + $0x418] sm:$0xff]
      %v586 = vld [vmem:[%s1 + $0x420] sm:$0xff]
      %v587 = vld [vmem:[%s1 + $0x428] sm:$0xff]
      %v588 = vld [vmem:[%s1 + $0x430] sm:$0xff]
      %v589 = vld [vmem:[%s1 + $0x438] sm:$0xff]
      %v590 = vld [vmem:[%s1 + $0x440] sm:$0xff]
      %v591 = vld [vmem:[%s1 + $0x448] sm:$0xff]
      %v592 = vld [vmem:[%s1 + $0x450] sm:$0xff]
      %v593 = vld [vmem:[%s1 + $0x458] sm:$0xff]
      %v594 = vld [vmem:[%s1 + $0x460] sm:$0xff]
      %v595 = vld [vmem:[%s1 + $0x468] sm:$0xff]
      %v596 = vld [vmem:[%s1 + $0x470] sm:$0xff]
      %v597 = vld [vmem:[%s1 + $0x478] sm:$0xff]
      %598 = vmatpush.msra.mxu0 %v469
      %599 = vmatpush.msra.mxu0 %v468
      %600 = vmatpush.msra.mxu0 %v467
      %601 = vmatpush.msra.mxu0 %v466
      %602 = vmatpush.msra.mxu0 %v465
      %603 = vmatpush.msra.mxu0 %v464
      %604 = vmatpush.msra.mxu0 %v463
      %605 = vmatpush.msra.mxu0 %v462
      %606 = vmatpush.msra.mxu0 %v461
      %607 = vmatpush.msra.mxu0 %v460
      %608 = vmatpush.msra.mxu0 %v459
      %609 = vmatpush.msra.mxu0 %v458
      %610 = vmatpush.msra.mxu0 %v457
      %611 = vmatpush.msra.mxu0 %v456
      %612 = vmatpush.msra.mxu0 %v455
      %613 = vmatpush.msra.mxu0 %v454
      %614 = vmatmul.f32.gmra.mxu0 %v330
      %v615 = vpop.f32.mrf.mxu0
      %v616 = vadd.f32 0.0, %v615
      %617 = vmatmul.f32.gmra.mxu0 %v331
      %v618 = vpop.f32.mrf.mxu0
      %v619 = vadd.f32 0.0, %v618
      %620 = vdwg.mxu0
      %621 = vmatpush.msra.mxu0 %v485
      %622 = vmatpush.msra.mxu0 %v484
      %623 = vmatpush.msra.mxu0 %v483
      %624 = vmatpush.msra.mxu0 %v482
      %625 = vmatpush.msra.mxu0 %v481
      %626 = vmatpush.msra.mxu0 %v480
      %627 = vmatpush.msra.mxu0 %v479
      %628 = vmatpush.msra.mxu0 %v478
      %629 = vmatpush.msra.mxu0 %v477
      %630 = vmatpush.msra.mxu0 %v476
      %631 = vmatpush.msra.mxu0 %v475
      %632 = vmatpush.msra.mxu0 %v474
      %633 = vmatpush.msra.mxu0 %v473
      %634 = vmatpush.msra.mxu0 %v472
      %635 = vmatpush.msra.mxu0 %v471
      %636 = vmatpush.msra.mxu0 %v470
      %637 = vmatmul.f32.gmra.mxu0 %v355
      %v638 = vpop.f32.mrf.mxu0
      %v639 = vadd.f32 %v616, %v638
      %640 = vmatmul.f32.gmra.mxu0 %v356
      %v641 = vpop.f32.mrf.mxu0
      %v642 = vadd.f32 %v619, %v641
      %643 = vdwg.mxu0
      %644 = vmatpush.msra.mxu0 %v501
      %645 = vmatpush.msra.mxu0 %v500
      %646 = vmatpush.msra.mxu0 %v499
      %647 = vmatpush.msra.mxu0 %v498
      %648 = vmatpush.msra.mxu0 %v497
      %649 = vmatpush.msra.mxu0 %v496
      %650 = vmatpush.msra.mxu0 %v495
      %651 = vmatpush.msra.mxu0 %v494
      %652 = vmatpush.msra.mxu0 %v493
      %653 = vmatpush.msra.mxu0 %v492
      %654 = vmatpush.msra.mxu0 %v491
      %655 = vmatpush.msra.mxu0 %v490
      %656 = vmatpush.msra.mxu0 %v489
      %657 = vmatpush.msra.mxu0 %v488
      %658 = vmatpush.msra.mxu0 %v487
      %659 = vmatpush.msra.mxu0 %v486
      %660 = vmatmul.f32.gmra.mxu0 %v368
      %v661 = vpop.f32.mrf.mxu0
      %v662 = vadd.f32 %v639, %v661
      %663 = vmatmul.f32.gmra.mxu0 %v369
      %v664 = vpop.f32.mrf.mxu0
      %v665 = vadd.f32 %v642, %v664
      %666 = vdwg.mxu0
      %667 = vmatpush.msra.mxu0 %v517
      %668 = vmatpush.msra.mxu0 %v516
      %669 = vmatpush.msra.mxu0 %v515
      %670 = vmatpush.msra.mxu0 %v514
      %671 = vmatpush.msra.mxu0 %v513
      %672 = vmatpush.msra.mxu0 %v512
      %673 = vmatpush.msra.mxu0 %v511
      %674 = vmatpush.msra.mxu0 %v510
      %675 = vmatpush.msra.mxu0 %v509
      %676 = vmatpush.msra.mxu0 %v508
      %677 = vmatpush.msra.mxu0 %v507
      %678 = vmatpush.msra.mxu0 %v506
      %679 = vmatpush.msra.mxu0 %v505
      %680 = vmatpush.msra.mxu0 %v504
      %681 = vmatpush.msra.mxu0 %v503
      %682 = vmatpush.msra.mxu0 %v502
      %683 = vmatmul.f32.gmra.mxu0 %v377
      %v684 = vpop.f32.mrf.mxu0
      %v685 = vadd.f32 %v662, %v684
      %686 = vmatmul.f32.gmra.mxu0 %v379
      %v687 = vpop.f32.mrf.mxu0
      %v688 = vadd.f32 %v665, %v687
      %689 = vdwg.mxu0
      %690 = vmatpush.msra.mxu0 %v533
      %691 = vmatpush.msra.mxu0 %v532
      %692 = vmatpush.msra.mxu0 %v531
      %693 = vmatpush.msra.mxu0 %v530
      %694 = vmatpush.msra.mxu0 %v529
      %695 = vmatpush.msra.mxu0 %v528
      %696 = vmatpush.msra.mxu0 %v527
      %697 = vmatpush.msra.mxu0 %v526
      %698 = vmatpush.msra.mxu0 %v525
      %699 = vmatpush.msra.mxu0 %v524
      %700 = vmatpush.msra.mxu0 %v523
      %701 = vmatpush.msra.mxu0 %v522
      %702 = vmatpush.msra.mxu0 %v521
      %703 = vmatpush.msra.mxu0 %v520
      %704 = vmatpush.msra.mxu0 %v519
      %705 = vmatpush.msra.mxu0 %v518
      %706 = vmatmul.f32.gmra.mxu0 %v397
      %v707 = vpop.f32.mrf.mxu0
      %v708 = vadd.f32 %v685, %v707
      %709 = vmatmul.f32.gmra.mxu0 %v398
      %v710 = vpop.f32.mrf.mxu0
      %v711 = vadd.f32 %v688, %v710
      %712 = vdwg.mxu0
      %713 = vmatpush.msra.mxu0 %v549
      %714 = vmatpush.msra.mxu0 %v548
      %715 = vmatpush.msra.mxu0 %v547
      %716 = vmatpush.msra.mxu0 %v546
      %717 = vmatpush.msra.mxu0 %v545
      %718 = vmatpush.msra.mxu0 %v544
      %719 = vmatpush.msra.mxu0 %v543
      %720 = vmatpush.msra.mxu0 %v542
      %721 = vmatpush.msra.mxu0 %v541
      %722 = vmatpush.msra.mxu0 %v540
      %723 = vmatpush.msra.mxu0 %v539
      %724 = vmatpush.msra.mxu0 %v538
      %725 = vmatpush.msra.mxu0 %v537
      %726 = vmatpush.msra.mxu0 %v536
      %727 = vmatpush.msra.mxu0 %v535
      %728 = vmatpush.msra.mxu0 %v534
      %729 = vmatmul.f32.gmra.mxu0 %v409
      %v730 = vpop.f32.mrf.mxu0
      %v731 = vadd.f32 %v708, %v730
      %732 = vmatmul.f32.gmra.mxu0 %v410
      %v733 = vpop.f32.mrf.mxu0
      %v734 = vadd.f32 %v711, %v733
      %735 = vdwg.mxu0
      %736 = vmatpush.msra.mxu0 %v565
      %737 = vmatpush.msra.mxu0 %v564
      %738 = vmatpush.msra.mxu0 %v563
      %739 = vmatpush.msra.mxu0 %v562
      %740 = vmatpush.msra.mxu0 %v561
      %741 = vmatpush.msra.mxu0 %v560
      %742 = vmatpush.msra.mxu0 %v559
      %743 = vmatpush.msra.mxu0 %v558
      %744 = vmatpush.msra.mxu0 %v557
      %745 = vmatpush.msra.mxu0 %v556
      %746 = vmatpush.msra.mxu0 %v555
      %747 = vmatpush.msra.mxu0 %v554
      %748 = vmatpush.msra.mxu0 %v553
      %749 = vmatpush.msra.mxu0 %v552
      %750 = vmatpush.msra.mxu0 %v551
      %751 = vmatpush.msra.mxu0 %v550
      %752 = vmatmul.f32.gmra.mxu0 %v418
      %v753 = vpop.f32.mrf.mxu0
      %v754 = vadd.f32 %v731, %v753
      %755 = vmatmul.f32.gmra.mxu0 %v420
      %v756 = vpop.f32.mrf.mxu0
      %v757 = vadd.f32 %v734, %v756
      %758 = vdwg.mxu0
      %759 = vmatpush.msra.mxu0 %v581
      %760 = vmatpush.msra.mxu0 %v580
      %761 = vmatpush.msra.mxu0 %v579
      %762 = vmatpush.msra.mxu0 %v578
      %763 = vmatpush.msra.mxu0 %v577
      %764 = vmatpush.msra.mxu0 %v576
      %765 = vmatpush.msra.mxu0 %v575
      %766 = vmatpush.msra.mxu0 %v574
      %767 = vmatpush.msra.mxu0 %v573
      %768 = vmatpush.msra.mxu0 %v572
      %769 = vmatpush.msra.mxu0 %v571
      %770 = vmatpush.msra.mxu0 %v570
      %771 = vmatpush.msra.mxu0 %v569
      %772 = vmatpush.msra.mxu0 %v568
      %773 = vmatpush.msra.mxu0 %v567
      %774 = vmatpush.msra.mxu0 %v566
      %775 = vmatmul.f32.gmra.mxu0 %v438
      %v776 = vpop.f32.mrf.mxu0
      %v777 = vadd.f32 %v754, %v776
      %778 = vmatmul.f32.gmra.mxu0 %v439
      %v779 = vpop.f32.mrf.mxu0
      %v780 = vadd.f32 %v757, %v779
      %781 = vdwg.mxu0
      %782 = vmatpush.msra.mxu0 %v597
      %783 = vmatpush.msra.mxu0 %v596
      %784 = vmatpush.msra.mxu0 %v595
      %785 = vmatpush.msra.mxu0 %v594
      %786 = vmatpush.msra.mxu0 %v593
      %787 = vmatpush.msra.mxu0 %v592
      %788 = vmatpush.msra.mxu0 %v591
      %789 = vmatpush.msra.mxu0 %v590
      %790 = vmatpush.msra.mxu0 %v589
      %791 = vmatpush.msra.mxu0 %v588
      %792 = vmatpush.msra.mxu0 %v587
      %793 = vmatpush.msra.mxu0 %v586
      %794 = vmatpush.msra.mxu0 %v585
      %795 = vmatpush.msra.mxu0 %v584
      %796 = vmatpush.msra.mxu0 %v583
      %797 = vmatpush.msra.mxu0 %v582
      %798 = vmatmul.f32.gmra.mxu0 %v450
      %v799 = vpop.f32.mrf.mxu0
      %v800 = vadd.f32 %v777, %v799
      %801 = vmatmul.f32.gmra.mxu0 %v451
      %v802 = vpop.f32.mrf.mxu0
      %v803 = vadd.f32 %v780, %v802
      %804 = vdwg.mxu0
      %805 = vst [vmem:[%s262] sm:$0xff] %v800
      %806 = vst [vmem:[%s262 + $0x8] sm:$0xff] %v803
      %v807 = vadd.f32 %v800, %v803
      %v808 = vrot.slane %v807, 4
      %v809 = vadd.f32 %v807, %v808
      %v810 = vrot.slane %v809, 2
      %v811 = vadd.f32 %v809, %v810
      %v812 = vrot.slane %v811, 1
      %v813 = vadd.f32 %v811, %v812
      %814 = vst [vmem:[%s265] sm:$0x1] %v813
      %v815 = vmul.f32 %v800, %v800
      %v816 = vmul.f32 %v803, %v803
      %v817 = vadd.f32 %v815, %v816
      %v818 = vrot.slane %v817, 4
      %v819 = vadd.f32 %v817, %v818
      %v820 = vrot.slane %v819, 2
      %v821 = vadd.f32 %v819, %v820
      %v822 = vrot.slane %v821, 1
      %v823 = vadd.f32 %v821, %v822
      %824 = vst [vmem:[%s268] sm:$0x1] %v823
      %p825 = scmp.lt.s32.totalorder %s18, 1
      %s826 = scalar_select %p825, %s18, 1
      %s827 = smul.addr %s826, 2
      %s828 = smul.addr %s827, 8
      %s829 = scalar_lea.vmem %s4, %s828
      %p830 = scmp.lt.s32.totalorder %s18, 1
      %s831 = scalar_select %p830, %s18, 1
      %s832 = scalar_lea.vmem %s5, %s831
      %p833 = scmp.lt.s32.totalorder %s18, 1
      %s834 = scalar_select %p833, %s18, 1
      %s835 = scalar_lea.vmem %s6, %s834
      // Predicated region
      $region37: #{residual_block_nchw.4} parent=35 // pred_check
        %p836 = pneg %p125
      $region38: #{residual_block_nchw.4} parent=35 // pred_check_branch
        %838 = sbr.rel (%p836) target = $region40
      $region39: #{residual_block_nchw.4} parent=35 // pred_region
        _
      $region40: #{residual_block_nchw.4} parent=35 // pred_fallthru
        _
      // Predicated region
      $region41: #{residual_block_nchw.4} parent=35 // pred_check
        %p839 = pneg %p151
      $region42: #{residual_block_nchw.4} parent=35 // pred_check_branch
        %841 = sbr.rel (%p839) target = $region44
      $region43: #{residual_block_nchw.4} parent=35 // pred_region
        _
      $region44: #{residual_block_nchw.4} parent=35 // pred_fallthru
        _
      // Predicated region
      $region45: #{residual_block_nchw.4} parent=35 // pred_check
        %p842 = pneg %p177
      $region46: #{residual_block_nchw.4} parent=35 // pred_check_branch
        %844 = sbr.rel (%p842) target = $region48
      $region47: #{residual_block_nchw.4} parent=35 // pred_region
        _
      $region48: #{residual_block_nchw.4} parent=35 // pred_fallthru
        _
    $region36: #{residual_block_nchw.4} parent=5 // pred_fallthru
      _
    %p845 = scmp.le.s32.totalorder 2, %s13
    // Predicated region
    $region49: #{residual_block_nchw.4} parent=5 // pred_check
      %p846 = pneg %p845
    $region50: #{residual_block_nchw.4} parent=5 // pred_check_branch
      %848 = sbr.rel (%p846) target = $region52
    $region51: #{residual_block_nchw.4} parent=5 // pred_region
      %s849 = ssub.s32 %s13, 2
      // Predicated region
      $region53: #{residual_block_nchw.4} parent=51 // pred_check
        %p850 = pneg %p131
      $region54: #{residual_block_nchw.4} parent=51 // pred_check_branch
        %852 = sbr.rel (%p850) target = $region56
      $region55: #{residual_block_nchw.4} parent=51 // pred_region
        %p853 = scmp.lt.s32.totalorder %s19, 1
        %s854 = scalar_select %p853, %s19, 1
        %s855 = smul.addr %s854, 2
        %s856 = smul.addr %s855, 8
        %s857 = scalar_lea.vmem %s4, %s856
      $region56: #{residual_block_nchw.4} parent=51 // pred_fallthru
        _
      // Predicated region
      $region57: #{residual_block_nchw.4} parent=51 // pred_check
        %p858 = pneg %p157
      $region58: #{residual_block_nchw.4} parent=51 // pred_check_branch
        %860 = sbr.rel (%p858) target = $region60
      $region59: #{residual_block_nchw.4} parent=51 // pred_region
        %p861 = scmp.lt.s32.totalorder %s19, 1
        %s862 = scalar_select %p861, %s19, 1
        %s863 = scalar_lea.vmem %s5, %s862
      $region60: #{residual_block_nchw.4} parent=51 // pred_fallthru
        _
      // Predicated region
      $region61: #{residual_block_nchw.4} parent=51 // pred_check
        %p864 = pneg %p183
      $region62: #{residual_block_nchw.4} parent=51 // pred_check_branch
        %866 = sbr.rel (%p864) target = $region64
      $region63: #{residual_block_nchw.4} parent=51 // pred_region
        %p867 = scmp.lt.s32.totalorder %s19, 1
        %s868 = scalar_select %p867, %s19, 1
        %s869 = scalar_lea.vmem %s6, %s868
      $region64: #{residual_block_nchw.4} parent=51 // pred_fallthru
        _
    $region52: #{residual_block_nchw.4} parent=5 // pred_fallthru
      _
  $region6: #{residual_block_nchw.4} parent=0 // loop_footer
    %s17 = sadd.s32 1, %s13
  $region7: #{residual_block_nchw.4} parent=0 // loop_footer_branch
    %12 = sbr.rel target = $region3
  $region8: #{residual_block_nchw.4} parent=0 // loop_exit
    _

// kernel: residual_block_nchw.3
$region0: #{residual_block_nchw.3}
  #allocation0 [shape = 'u32[]', space=smem, size = 0x4, offset = 0x4, fixed_abs, tag = 'smem constant byte address 0x4 - core index']
  #allocation1 [shape = 'u32[72,128]{1,0:T(1,128)}', space=vmem, size = 0x9000, scoped, tag = 'internal scratch']
  #allocation2 [shape = 'f32[18,144]{1,0:T(8,128)}', space=vmem, size = 0x6000, scoped, tag = 'scratch operand']
  %s0 = inlined_call_operand.vmem [shape: f32[2,16,128], index: 0, kind: input, shape index: {}]
  %s1 = inlined_call_operand.vmem [shape: f32[1152,128], index: 1, kind: input, shape index: {}]
  %s2 = inlined_call_operand.vmem [shape: f32[1,128], index: 2, kind: input, shape index: {}]
  %s3 = inlined_call_operand.vmem [shape: f32[1,128], index: 3, kind: input, shape index: {}]
  %s4 = inlined_call_operand.vmem [shape: f32[2,16,128], index: 4, kind: output, shape index: {0}]
  %s5 = inlined_call_operand.vmem [shape: f32[2,1,128], index: 5, kind: output, shape index: {1}]
  %s6 = inlined_call_operand.vmem [shape: f32[2,1,128], index: 6, kind: output, shape index: {2}]
  %7 = xla_tuple %s4, %s5, %s6
  %s8 = sld [smem:[#allocation0]]
  $region65: #{residual_block_nchw.3} parent=0
    _
  %s10 = ssub.s32 1, %s8
  %s11 = scalar_select 0, %s10, %s8
  loop: start=0, step=1, limit=4
  $region2: #{residual_block_nchw.3} parent=0 // loop_pre_header
    _
  $region3: #{residual_block_nchw.3} parent=0 // loop_header
    %s13 = sphi 0, %s17
    %p14 = scmp.ge.s32.totalorder %s13, 4
    %s23 = sphi 0, %s25
    %s26 = sphi 0, %s23
    %s27 = sphi 0, %s26
    %s43 = sphi 0, %s27
    %s47 = sphi 0, %s47
    %s49 = sphi 0, %s47
    %s50 = sphi 0, %s49
    %s64 = sphi 0, %s50
    %s68 = sphi 0, %s68
    %s70 = sphi 0, %s68
    %s71 = sphi 0, %s70
    %s85 = sphi 0, %s71
    %s89 = sphi 0, %s89
    %s91 = sphi 0, %s89
    %s92 = sphi 0, %s91
    %s106 = sphi 0, %s92
    %s112 = sphi 0, %s114
    %s115 = sphi 0, %s112
    %s116 = sphi 0, %s115
    %s132 = sphi 0, %s116
    %s138 = sphi 0, %s140
    %s141 = sphi 0, %s138
    %s142 = sphi 0, %s141
    %s158 = sphi 0, %s142
    %s164 = sphi 0, %s166
    %s167 = sphi 0, %s164
    %s168 = sphi 0, %s167
    %s184 = sphi 0, %s168
  $region4: #{residual_block_nchw.3} parent=0 // loop_header_branch
    %16 = sbr.rel (%p14) target = $region8
  $region5: #{residual_block_nchw.3} parent=0 // loop_body
    %s18 = ssub.s32 %s13, 1
    %s19 = ssub.s32 %s13, 2
    %s20 = sadd.s32 %s13, 1
    %s21 = ssub.s32 %s13, %s20
    %p22 = scmp.eq.s32.totalorder %s21, 0
    %s24 = sadd.s32 %s23, 1
    %s25 = scalar_select %p22, %s23, %s24
    %p28 = pneg %p22
    %p29 = scmp.eq.s32.totalorder %s13, 1
    %p30 = por %p28, %p29
    %p31 = scmp.ne.s32.totalorder %s23, %s26
    %p32 = scmp.eq.s32.totalorder %s13, 0
    %p33 = por %p31, %p32
    %p34 = scmp.ne.s32.totalorder %s23, %s26
    %p35 = scmp.eq.s32.totalorder %s18, 1
    %p36 = por %p34, %p35
    %p37 = scmp.ne.s32.totalorder %s26, %s27
    %p38 = scmp.eq.s32.totalorder %s18, 0
    %p39 = por %p37, %p38
    %p40 = scmp.ne.s32.totalorder %s26, %s27
    %p41 = scmp.eq.s32.totalorder %s19, 1
    %p42 = por %p40, %p41
    %p44 = scmp.ne.s32.totalorder %s27, %s43
    %p45 = scmp.eq.s32.totalorder %s19, 0
    %p46 = por %p44, %p45
    %s48 = sadd.s32 %s47, 1
    %p51 = scmp.eq.s32.totalorder %s13, 1
    %p52 = scmp.ne.s32.totalorder %s47, %s49
    %p53 = scmp.eq.s32.totalorder %s13, 0
    %p54 = por %p52, %p53
    %p55 = scmp.ne.s32.totalorder %s47, %s49
    %p56 = scmp.eq.s32.totalorder %s18, 1
    %p57 = por %p55, %p56
    %p58 = scmp.ne.s32.totalorder %s49, %s50
    %p59 = scmp.eq.s32.totalorder %s18, 0
    %p60 = por %p58, %p59
    %p61 = scmp.ne.s32.totalorder %s49, %s50
    %p62 = scmp.eq.s32.totalorder %s19, 1
    %p63 = por %p61, %p62
    %p65 = scmp.ne.s32.totalorder %s50, %s64
    %p66 = scmp.eq.s32.totalorder %s19, 0
    %p67 = por %p65, %p66
    %s69 = sadd.s32 %s68, 1
    %p72 = scmp.eq.s32.totalorder %s13, 1
    %p73 = scmp.ne.s32.totalorder %s68, %s70
    %p74 = scmp.eq.s32.totalorder %s13, 0
    %p75 = por %p73, %p74
    %p76 = scmp.ne.s32.totalorder %s68, %s70
    %p77 = scmp.eq.s32.totalorder %s18, 1
    %p78 = por %p76, %p77
    %p79 = scmp.ne.s32.totalorder %s70, %s71
    %p80 = scmp.eq.s32.totalorder %s18, 0
    %p81 = por %p79, %p80
    %p82 = scmp.ne.s32.totalorder %s70, %s71
    %p83 = scmp.eq.s32.totalorder %s19, 1
    %p84 = por %p82, %p83
    %p86 = scmp.ne.s32.totalorder %s71, %s85
    %p87 = scmp.eq.s32.totalorder %s19, 0
    %p88 = por %p86, %p87
    %s90 = sadd.s32 %s89, 1
    %p93 = scmp.eq.s32.totalorder %s13, 1
    %p94 = scmp.ne.s32.totalorder %s89, %s91
    %p95 = scmp.eq.s32.totalorder %s13, 0
    %p96 = por %p94, %p95
    %p97 = scmp.ne.s32.totalorder %s89, %s91
    %p98 = scmp.eq.s32.totalorder %s18, 1
    %p99 = por %p97, %p98
    %p100 = scmp.ne.s32.totalorder %s91, %s92
    %p101 = scmp.eq.s32.totalorder %s18, 0
    %p102 = por %p100, %p101
    %p103 = scmp.ne.s32.totalorder %s91, %s92
    %p104 = scmp.eq.s32.totalorder %s19, 1
    %p105 = por %p103, %p104
    %p107 = scmp.ne.s32.totalorder %s92, %s106
    %p108 = scmp.eq.s32.totalorder %s19, 0
    %p109 = por %p107, %p108
    %s110 = ssub.s32 %s13, %s20
    %p111 = scmp.eq.s32.totalorder %s110, 0
    %s113 = sadd.s32 %s112, 1
    %s114 = scalar_select %p111, %s112, %s113
    %p117 = pneg %p111
    %p118 = scmp.eq.s32.totalorder %s13, 1
    %p119 = por %p117, %p118
    %p120 = scmp.ne.s32.totalorder %s112, %s115
    %p121 = scmp.eq.s32.totalorder %s13, 0
    %p122 = por %p120, %p121
    %p123 = scmp.ne.s32.totalorder %s112, %s115
    %p124 = scmp.eq.s32.totalorder %s18, 1
    %p125 = por %p123, %p124
    %p126 = scmp.ne.s32.totalorder %s115, %s116
    %p127 = scmp.eq.s32.totalorder %s18, 0
    %p128 = por %p126, %p127
    %p129 = scmp.ne.s32.totalorder %s115, %s116
    %p130 = scmp.eq.s32.totalorder %s19, 1
    %p131 = por %p129, %p130
    %p133 = scmp.ne.s32.totalorder %s116, %s132
    %p134 = scmp.eq.s32.totalorder %s19, 0
    %p135 = por %p133, %p134
    %s136 = ssub.s32 %s13, %s20
    %p137 = scmp.eq.s32.totalorder %s136, 0
    %s139 = sadd.s32 %s138, 1
    %s140 = scalar_select %p137, %s138, %s139
    %p143 = pneg %p137
    %p144 = scmp.eq.s32.totalorder %s13, 1
    %p145 = por %p143, %p144
    %p146 = scmp.ne.s32.totalorder %s138, %s141
    %p147 = scmp.eq.s32.totalorder %s13, 0
    %p148 = por %p146, %p147
    %p149 = scmp.ne.s32.totalorder %s138, %s141
    %p150 = scmp.eq.s32.totalorder %s18, 1
    %p151 = por %p149, %p150
    %p152 = scmp.ne.s32.totalorder %s141, %s142
    %p153 = scmp.eq.s32.totalorder %s18, 0
    %p154 = por %p152, %p153
    %p155 = scmp.ne.s32.totalorder %s141, %s142
    %p156 = scmp.eq.s32.totalorder %s19, 1
    %p157 = por %p155, %p156
    %p159 = scmp.ne.s32.totalorder %s142, %s158
    %p160 = scmp.eq.s32.totalorder %s19, 0
    %p161 = por %p159, %p160
    %s162 = ssub.s32 %s13, %s20
    %p163 = scmp.eq.s32.totalorder %s162, 0
    %s165 = sadd.s32 %s164, 1
    %s166 = scalar_select %p163, %s164, %s165
    %p169 = pneg %p163
    %p170 = scmp.eq.s32.totalorder %s13, 1
    %p171 = por %p169, %p170
    %p172 = scmp.ne.s32.totalorder %s164, %s167
    %p173 = scmp.eq.s32.totalorder %s13, 0
    %p174 = por %p172, %p173
    %p175 = scmp.ne.s32.totalorder %s164, %s167
    %p176 = scmp.eq.s32.totalorder %s18, 1
    %p177 = por %p175, %p176
    %p178 = scmp.ne.s32.totalorder %s167, %s168
    %p179 = scmp.eq.s32.totalorder %s18, 0
    %p180 = por %p178, %p179
    %p181 = scmp.ne.s32.totalorder %s167, %s168
    %p182 = scmp.eq.s32.totalorder %s19, 1
    %p183 = por %p181, %p182
    %p185 = scmp.ne.s32.totalorder %s168, %s184
    %p186 = scmp.eq.s32.totalorder %s19, 0
    %p187 = por %p185, %p186
    %p188 = scmp.le.s32.totalorder 1, %s13
    %p189 = scmp.lt.s32.totalorder %s13, 3
    %p190 = pnand %p188, %p189
    %p191 = pneg %p190
    // Predicated region
    $region9: #{residual_block_nchw.3} parent=5 // pred_check
      _
    $region10: #{residual_block_nchw.3} parent=5 // pred_check_branch
      %193 = sbr.rel (%p190) target = $region12
    $region11: #{residual_block_nchw.3} parent=5 // pred_region
      %s194 = ssub.s32 %s13, 1
      // Predicated region
      $region13: #{residual_block_nchw.3} parent=11 // pred_check
        %p195 = pneg %p60
      $region14: #{residual_block_nchw.3} parent=11 // pred_check_branch
        %197 = sbr.rel (%p195) target = $region16
      $region15: #{residual_block_nchw.3} parent=11 // pred_region
        _
      $region16: #{residual_block_nchw.3} parent=11 // pred_fallthru
        _
      // Predicated region
      $region17: #{residual_block_nchw.3} parent=11 // pred_check
        %p198 = pneg %p81
      $region18: #{residual_block_nchw.3} parent=11 // pred_check_branch
        %200 = sbr.rel (%p198) target = $region20
      $region19: #{residual_block_nchw.3} parent=11 // pred_region
        _
      $region20: #{residual_block_nchw.3} parent=11 // pred_fallthru
        _
      // Predicated region
      $region21: #{residual_block_nchw.3} parent=11 // pred_check
        %p201 = pneg %p102
      $region22: #{residual_block_nchw.3} parent=11 // pred_check_branch
        %203 = sbr.rel (%p201) target = $region24
      $region23: #{residual_block_nchw.3} parent=11 // pred_region
        _
      $region24: #{residual_block_nchw.3} parent=11 // pred_fallthru
        _
    $region12: #{residual_block_nchw.3} parent=5 // pred_fallthru
      _
    %p204 = scmp.lt.s32.totalorder %s13, 2
    // Predicated region
    $region25: #{residual_block_nchw.3} parent=5 // pred_check
      %p205 = pneg %p204
    $region26: #{residual_block_nchw.3} parent=5 // pred_check_branch
      %207 = sbr.rel (%p205) target = $region28
    $region27: #{residual_block_nchw.3} parent=5 // pred_region
      // Predicated region
      $region29: #{residual_block_nchw.3} parent=27 // pred_check
        %p208 = pneg %p33
      $region30: #{residual_block_nchw.3} parent=27 // pred_check_branch
        %210 = sbr.rel (%p208) target = $region32
      $region31: #{residual_block_nchw.3} parent=27 // pred_region
        %p211 = scmp.lt.s32.totalorder %s13, 1
        %s212 = scalar_select %p211, %s13, 1
        %s213 = smul.addr %s212, 2
        %s214 = smul.addr %s213, 8
        %s215 = scalar_lea.vmem %s0, %s214
      $region32: #{residual_block_nchw.3} parent=27 // pred_fallthru
        _
    $region28: #{residual_block_nchw.3} parent=5 // pred_fallthru
      _
    %p216 = scmp.le.s32.totalorder 1, %s13
    %p217 = scmp.lt.s32.totalorder %s13, 3
    %p218 = pnand %p216, %p217
    %p219 = pneg %p218
    // Predicated region
    $region33: #{residual_block_nchw.3} parent=5 // pred_check
      _
    $region34: #{residual_block_nchw.3} parent=5 // pred_check_branch
      %221 = sbr.rel (%p218) target = $region36
    $region35: #{residual_block_nchw.3} parent=5 // pred_region
      %s222 = ssub.s32 %s13, 1
      %p223 = scmp.lt.s32.totalorder %s18, 1
      %s224 = scalar_select %p223, %s18, 1
      %s225 = smul.addr %s224, 2
      %s226 = smul.addr %s225, 8
      %s227 = scalar_lea.vmem %s0, %s226
      %p228 = pneg %p39
      %p229 = pneg %p36
      %p230 = pneg %p60
      %p231 = pneg %p57
      %p232 = pneg %p81
      %p233 = pneg %p78
      %p234 = pneg %p102
      %p235 = pneg %p99
      %p236 = pneg %p128
      %p237 = pneg %p125
      %p238 = scmp.lt.s32.totalorder %s18, 1
      %s239 = scalar_select %p238, %s18, 1
      %s240 = smul.addr %s239, 2
      %s241 = smul.addr %s240, 8
      %s242 = scalar_lea.vmem %s4, %s241
      %p243 = pneg %p154
      %p244 = pneg %p151
      %p245 = scmp.lt.s32.totalorder %s18, 1
      %s246 = scalar_select %p245, %s18, 1
      %s247 = scalar_lea.vmem %s5, %s246
      %p248 = pneg %p180
      %p249 = pneg %p177
      %p250 = scmp.lt.s32.totalorder %s18, 1
      %s251 = scalar_select %p250, %s18, 1
      %s252 = scalar_lea.vmem %s6, %s251
      %p253 = scmp.lt.s32.totalorder %s18, 1
      %s254 = scalar_select %p253, %s18, 1
      %s255 = smul.addr %s254, 2
      %s256 = smul.addr %s255, 8
      %s257 = scalar_lea.vmem %s0, %s256
      %p258 = scmp.lt.s32.totalorder %s18, 1
      %s259 = scalar_select %p258, %s18, 1
      %s260 = smul.addr %s259, 2
      %s261 = smul.addr %s260, 8
      %s262 = scalar_lea.vmem %s4, %s261
      %p263 = scmp.lt.s32.totalorder %s18, 1
      %s264 = scalar_select %p263, %s18, 1
      %s265 = scalar_lea.vmem %s5, %s264
      %p266 = scmp.lt.s32.totalorder %s18, 1
      %s267 = scalar_select %p266, %s18, 1
      %s268 = scalar_lea.vmem %s6, %s267
      %v269 = vld [vmem:[%s257] sm:$0xff]
      %v270 = vld [vmem:[%s257 + $0x8] sm:$0xff]
      %v271 = vlaneseq
      %vm272 = vcmp.ge.s32.totalorder %v271, 0
      %vm273 = vcmp.lt.s32.totalorder %v271, 144
      %vm274 = vmand %vm272, %vm273
      %275 = vst.msk [vmem:[#allocation2] ss:$8 sm:$0x3] %vm274, 0.0
      %276 = vst.msk [vmem:[#allocation2] ss:$8 sm:$0x0] %vm274, 0.0
      %s277 = scalar_lea.vmem [#allocation2], 33
      %278 = vst.msk [vmem:[%s277] ss:$8 sm:$0x3] %vm274, 0.0
      %279 = vst.msk [vmem:[%s277] ss:$8 sm:$0x0] %vm274, 0.0
      %vm280 = vcmask 64512
      %281 = vst.msk [vmem:[#allocation2] sm:$0xff] %vm280, 0.0
      %282 = vst.msk [vmem:[#allocation2 + $0x10] sm:$0xff] %vm280, 0.0
      %vm283 = vcmask 58368
      %284 = vst.msk [vmem:[#allocation2 + $0x20] sm:$0x3] %vm283, 0.0
      %vm285 = vcmask 130112
      %286 = vst.msk [vmem:[#allocation2 + $0x8] sm:$0xff] %vm285, 0.0
      %287 = vst.msk [vmem:[#allocation2 + $0x18] sm:$0xff] %vm285, 0.0
      %vm288 = vcmask 123968
      %289 = vst.msk [vmem:[#allocation2 + $0x28] sm:$0x3] %vm288, 0.0
      %vm292 = vcmask 1040384
      %v293 = vrot.slane %v269, 7
      %v294 = vrot.slane %v270, 7
      %v295 = vsel %vm292, %v293, %v294
      %296 = vrot.lane.b32.xlu0 %v293, 8
      %v297 = vpop.permute.xlu0 %296
      %298 = vrot.lane.b32.xlu0 %v295, 8
      %v299 = vpop.permute.xlu0 %298
      %300 = vrot.lane.b32.xlu0 %v294, 8
      %v301 = vpop.permute.xlu0 %300
      %vm305 = vcmask 1047617
      %306 = vst.msk [vmem:[#allocation2] sm:$0xfe] %vm305, %v297
      %vm307 = vcmask 64513
      %308 = vst.msk [vmem:[#allocation2 + $0x8] sm:$0xfe] %vm307, %v297
      %vm309 = vcmask 1047616
      %310 = vst.msk [vmem:[#allocation2 + $0x10] sm:$0xff] %vm309, %v299
      %311 = vst.msk [vmem:[#allocation2 + $0x18] sm:$0xff] %vm280, %v299
      %vm312 = vcmask 1040448
      %313 = vst.msk [vmem:[#allocation2 + $0x20] sm:$0x1] %vm312, %v301
      %vm314 = vcmask 57344
      %315 = vst.msk [vmem:[#allocation2 + $0x28] sm:$0x1] %vm314, %v301
      %v316 = vld [vmem:[#allocation2] sm:$0xff]
      %v317 = vld [vmem:[#allocation2 + $0x10] sm:$0xff]
      %v318 = vld [vmem:[#allocation2 + $0x8] sm:$0xff]
      %v319 = vld [vmem:[#allocation2 + $0x18] sm:$0xff]
      %v320 = vld [vmem:[#allocation2] sm:$0xfe]
      %v321 = vld [vmem:[#allocation2 + $0x20] sm:$0x1]
      %v322 = vld [vmem:[#allocation2 + $0x8] sm:$0xfe]
      %v323 = vld [vmem:[#allocation2 + $0x28] sm:$0x1]
      %v324 = vld [vmem:[#allocation2] sm:$0xfc]
      %v325 = vld [vmem:[#allocation2 + $0x20] sm:$0x3]
      %v326 = vld [vmem:[#allocation2 + $0x8] sm:$0xfc]
      %v327 = vld [vmem:[#allocation2 + $0x28] sm:$0x3]
      %332 = vrot.lane.b32.xlu0 %v316, 120
      %v333 = vpop.permute.xlu0 %332
      %334 = vrot.lane.b32.xlu0 %v318, 120
      %v335 = vpop.permute.xlu0 %334
      %336 = vrot.lane.b32.xlu0 %v317, 120
      %v337 = vpop.permute.xlu0 %336
      %338 = vrot.lane.b32.xlu0 %v319, 120
      %v339 = vpop.permute.xlu0 %338
      %vm340 = vcmask 982016
      %v341 = vsel %vm340, %v333, %v335
      %v342 = vsel %vm340, %v337, %v339
      %345 = vrot.lane.b32.xlu0 %v316, 112
      %v346 = vpop.permute.xlu0 %345
      %347 = vrot.lane.b32.xlu0 %v318, 112
      %v348 = vpop.permute.xlu0 %347
      %349 = vrot.lane.b32.xlu0 %v317, 112
      %v350 = vpop.permute.xlu0 %349
      %351 = vrot.lane.b32.xlu0 %v319, 112
      %v352 = vpop.permute.xlu0 %351
      %vm353 = vcmask 916480
      %v354 = vsel %vm353, %v346, %v348
      %v355 = vsel %vm353, %v350, %v352
      %vm360 = vcmask 1046528
      %v361 = vrot.slane %v320, 1
      %v362 = vrot.slane %v317, 1
      %v363 = vsel %vm360, %v361, %v362
      %v364 = vrot.slane %v321, 1
      %v365 = vsel %vm360, %v362, %v364
      %v370 = vrot.slane %v322, 1
      %v371 = vrot.slane %v319, 1
      %v372 = vsel %vm360, %v370, %v371
      %v373 = vrot.slane %v323, 1
      %v374 = vsel %vm360, %v371, %v373
      %375 = vrot.lane.b32.xlu0 %v363, 120
      %v376 = vpop.permute.xlu0 %375
      %377 = vrot.lane.b32.xlu0 %v372, 120
      %v378 = vpop.permute.xlu0 %377
      %379 = vrot.lane.b32.xlu0 %v365, 120
      %v380 = vpop.permute.xlu0 %379
      %381 = vrot.lane.b32.xlu0 %v374, 120
      %v382 = vpop.permute.xlu0 %381
      %v383 = vsel %vm340, %v376, %v378
      %v384 = vsel %vm340, %v380, %v382
      %387 = vrot.lane.b32.xlu0 %v363, 112
      %v388 = vpop.permute.xlu0 %387
      %389 = vrot.lane.b32.xlu0 %v372, 112
      %v390 = vpop.permute.xlu0 %389
      %391 = vrot.lane.b32.xlu0 %v365, 112
      %v392 = vpop.permute.xlu0 %391
      %393 = vrot.lane.b32.xlu0 %v374, 112
      %v394 = vpop.permute.xlu0 %393
      %v395 = vsel %vm353, %v388, %v390
      %v396 = vsel %vm353, %v392, %v394
      %vm401 = vcmask 1045504
      %v402 = vrot.slane %v324, 2
      %v403 = vrot.slane %v317, 2
      %v404 = vsel %vm401, %v402, %v403
      %v405 = vrot.slane %v325, 2
      %v406 = vsel %vm401, %v403, %v405
      %v411 = vrot.slane %v326, 2
      %v412 = vrot.slane %v319, 2
      %v413 = vsel %vm401, %v411, %v412
      %v414 = vrot.slane %v327, 2
      %v415 = vsel %vm401, %v412, %v414
      %416 = vrot.lane.b32.xlu0 %v404, 120
      %v417 = vpop.permute.xlu0 %416
      %418 = vrot.lane.b32.xlu0 %v413, 120
      %v419 = vpop.permute.xlu0 %418
      %420 = vrot.lane.b32.xlu0 %v406, 120
      %v421 = vpop.permute.xlu0 %420
      %422 = vrot.lane.b32.xlu0 %v415, 120
      %v423 = vpop.permute.xlu0 %422
      %v424 = vsel %vm340, %v417, %v419
      %v425 = vsel %vm340, %v421, %v423
      %428 = vrot.lane.b32.xlu0 %v404, 112
      %v429 = vpop.permute.xlu0 %428
      %430 = vrot.lane.b32.xlu0 %v413, 112
      %v431 = vpop.permute.xlu0 %430
      %432 = vrot.lane.b32.xlu0 %v406, 112
      %v433 = vpop.permute.xlu0 %432
      %434 = vrot.lane.b32.xlu0 %v415, 112
      %v435 = vpop.permute.xlu0 %434
      %v436 = vsel %vm353, %v429, %v431
      %v437 = vsel %vm353, %v433, %v435
      %v440 = vld [vmem:[%s1] sm:$0xff]
      %v441 = vld [vmem:[%s1 + $0x8] sm:$0xff]
      %v442 = vld [vmem:[%s1 + $0x10] sm:$0xff]
      %v443 = vld [vmem:[%s1 + $0x18] sm:$0xff]
      %v444 = vld [vmem:[%s1 + $0x20] sm:$0xff]
      %v445 = vld [vmem:[%s1 + $0x28] sm:$0xff]
      %v446 = vld [vmem:[%s1 + $0x30] sm:$0xff]
      %v447 = vld [vmem:[%s1 + $0x38] sm:$0xff]
      %v448 = vld [vmem:[%s1 + $0x40] sm:$0xff]
      %v449 = vld [vmem:[%s1 + $0x48] sm:$0xff]
      %v450 = vld [vmem:[%s1 + $0x50] sm:$0xff]
      %v451 = vld [vmem:[%s1 + $0x58] sm:$0xff]
      %v452 = vld [vmem:[%s1 + $0x60] sm:$0xff]
      %v453 = vld [vmem:[%s1 + $0x68] sm:$0xff]
      %v454 = vld [vmem:[%s1 + $0x70] sm:$0xff]
      %v455 = vld [vmem:[%s1 + $0x78] sm:$0xff]
      %v456 = vld [vmem:[%s1 + $0x80] sm:$0xff]
      %v457 = vld [vmem:[%s1 + $0x88] sm:$0xff]
      %v458 = vld [vmem:[%s1 + $0x90] sm:$0xff]
      %v459 = vld [vmem:[%s1 + $0x98] sm:$0xff]
      %v460 = vld [vmem:[%s1 + $0xa0] sm:$0xff]
      %v461 = vld [vmem:[%s1 + $0xa8] sm:$0xff]
      %v462 = vld [vmem:[%s1 + $0xb0] sm:$0xff]
      %v463 = vld [vmem:[%s1 + $0xb8] sm:$0xff]
      %v464 = vld [vmem:[%s1 + $0xc0] sm:$0xff]
      %v465 = vld [vmem:[%s1 + $0xc8] sm:$0xff]
      %v466 = vld [vmem:[%s1 + $0xd0] sm:$0xff]
      %v467 = vld [vmem:[%s1 + $0xd8] sm:$0xff]
      %v468 = vld [vmem:[%s1 + $0xe0] sm:$0xff]
      %v469 = vld [vmem:[%s1 + $0xe8] sm:$0xff]
      %v470 = vld [vmem:[%s1 + $0xf0] sm:$0xff]
      %v471 = vld [vmem:[%s1 + $0xf8] sm:$0xff]
      %v472 = vld [vmem:[%s1 + $0x100] sm:$0xff]
      %v473 = vld [vmem:[%s1 + $0x108] sm:$0xff]
      %v474 = vld [vmem:[%s1 + $0x110] sm:$0xff]
      %v475 = vld [vmem:[%s1 + $0x118] sm:$0xff]
      %v476 = vld [vmem:[%s1 + $0x120] sm:$0xff]
      %v477 = vld [vmem:[%s1 + $0x128] sm:$0xff]
      %v478 = vld [vmem:[%s1 + $0x130] sm:$0xff]
      %v479 = vld [vmem:[%s1 + $0x138] sm:$0xff]
      %v480 = vld [vmem:[%s1 + $0x140] sm:$0xff]
      %v481 = vld [vmem:[%s1 + $0x148] sm:$0xff]
      %v482 = vld [vmem:[%s1 + $0x150] sm:$0xff]
      %v483 = vld [vmem:[%s1 + $0x158] sm:$0xff]
      %v484 = vld [vmem:[%s1 + $0x160] sm:$0xff]
      %v485 = vld [vmem:[%s1 + $0x168] sm:$0xff]
      %v486 = vld [vmem:[%s1 + $0x170] sm:$0xff]
      %v487 = vld [vmem:[%s1 + $0x178] sm:$0xff]
      %v488 = vld [vmem:[%s1 + $0x180] sm:$0xff]
      %v489 = vld [vmem:[%s1 + $0x188] sm:$0xff]
      %v490 = vld [vmem:[%s1 + $0x190] sm:$0xff]
      %v491 = vld [vmem:[%s1 + $0x198] sm:$0xff]
      %v492 = vld [vmem:[%s1 + $0x1a0] sm:$0xff]
      %v493 = vld [vmem:[%s1 + $0x1a8] sm:$0xff]
      %v494 = vld [vmem:[%s1 + $0x1b0] sm:$0xff]
      %v495 = vld [vmem:[%s1 + $0x1b8] sm:$0xff]
      %v496 = vld [vmem:[%s1 + $0x1c0] sm:$0xff]
      %v497 = vld [vmem:[%s1 + $0x1c8] sm:$0xff]
      %v498 = vld [vmem:[%s1 + $0x1d0] sm:$0xff]
      %v499 = vld [vmem:[%s1 + $0x1d8] sm:$0xff]
      %v500 = vld [vmem:[%s1 + $0x1e0] sm:$0xff]
      %v501 = vld [vmem:[%s1 + $0x1e8] sm:$0xff]
      %v502 = vld [vmem:[%s1 + $0x1f0] sm:$0xff]
      %v503 = vld [vmem:[%s1 + $0x1f8] sm:$0xff]
      %v504 = vld [vmem:[%s1 + $0x200] sm:$0xff]
      %v505 = vld [vmem:[%s1 + $0x208] sm:$0xff]
      %v506 = vld [vmem:[%s1 + $0x210] sm:$0xff]
      %v507 = vld [vmem:[%s1 + $0x218] sm:$0xff]
      %v508 = vld [vmem:[%s1 + $0x220] sm:$0xff]
      %v509 = vld [vmem:[%s1 + $0x228] sm:$0xff]
      %v510 = vld [vmem:[%s1 + $0x230] sm:$0xff]
      %v511 = vld [vmem:[%s1 + $0x238] sm:$0xff]
      %v512 = vld [vmem:[%s1 + $0x240] sm:$0xff]
      %v513 = vld [vmem:[%s1 + $0x248] sm:$0xff]
      %v514 = vld [vmem:[%s1 + $0x250] sm:$0xff]
      %v515 = vld [vmem:[%s1 + $0x258] sm:$0xff]
      %v516 = vld [vmem:[%s1 + $0x260] sm:$0xff]
      %v517 = vld [vmem:[%s1 + $0x268] sm:$0xff]
      %v518 = vld [vmem:[%s1 + $0x270] sm:$0xff]
      %v519 = vld [vmem:[%s1 + $0x278] sm:$0xff]
      %v520 = vld [vmem:[%s1 + $0x280] sm:$0xff]
      %v521 = vld [vmem:[%s1 + $0x288] sm:$0xff]
      %v522 = vld [vmem:[%s1 + $0x290] sm:$0xff]
      %v523 = vld [vmem:[%s1 + $0x298] sm:$0xff]
      %v524 = vld [vmem:[%s1 + $0x2a0] sm:$0xff]
      %v525 = vld [vmem:[%s1 + $0x2a8] sm:$0xff]
      %v526 = vld [vmem:[%s1 + $0x2b0] sm:$0xff]
      %v527 = vld [vmem:[%s1 + $0x2b8] sm:$0xff]
      %v528 = vld [vmem:[%s1 + $0x2c0] sm:$0xff]
      %v529 = vld [vmem:[%s1 + $0x2c8] sm:$0xff]
      %v530 = vld [vmem:[%s1 + $0x2d0] sm:$0xff]
      %v531 = vld [vmem:[%s1 + $0x2d8] sm:$0xff]
      %v532 = vld [vmem:[%s1 + $0x2e0] sm:$0xff]
      %v533 = vld [vmem:[%s1 + $0x2e8] sm:$0xff]
      %v534 = vld [vmem:[%s1 + $0x2f0] sm:$0xff]
      %v535 = vld [vmem:[%s1 + $0x2f8] sm:$0xff]
      %v536 = vld [vmem:[%s1 + $0x300] sm:$0xff]
      %v537 = vld [vmem:[%s1 + $0x308] sm:$0xff]
      %v538 = vld [vmem:[%s1 + $0x310] sm:$0xff]
      %v539 = vld [vmem:[%s1 + $0x318] sm:$0xff]
      %v540 = vld [vmem:[%s1 + $0x320] sm:$0xff]
      %v541 = vld [vmem:[%s1 + $0x328] sm:$0xff]
      %v542 = vld [vmem:[%s1 + $0x330] sm:$0xff]
      %v543 = vld [vmem:[%s1 + $0x338] sm:$0xff]
      %v544 = vld [vmem:[%s1 + $0x340] sm:$0xff]
      %v545 = vld [vmem:[%s1 + $0x348] sm:$0xff]
      %v546 = vld [vmem:[%s1 + $0x350] sm:$0xff]
      %v547 = vld [vmem:[%s1 + $0x358] sm:$0xff]
      %v548 = vld [vmem:[%s1 + $0x360] sm:$0xff]
      %v549 = vld [vmem:[%s1 + $0x368] sm:$0xff]
      %v550 = vld [vmem:[%s1 + $0x370] sm:$0xff]
      %v551 = vld [vmem:[%s1 + $0x378] sm:$0xff]
      %v552 = vld [vmem:[%s1 + $0x380] sm:$0xff]
      %v553 = vld [vmem:[%s1 + $0x388] sm:$0xff]
      %v554 = vld [vmem:[%s1 + $0x390] sm:$0xff]
      %v555 = vld [vmem:[%s1 + $0x398] sm:$0xff]
      %v556 = vld [vmem:[%s1 + $0x3a0] sm:$0xff]
      %v557 = vld [vmem:[%s1 + $0x3a8] sm:$0xff]
      %v558 = vld [vmem:[%s1 + $0x3b0] sm:$0xff]
      %v559 = vld [vmem:[%s1 + $0x3b8] sm:$0xff]
      %v560 = vld [vmem:[%s1 + $0x3c0] sm:$0xff]
      %v561 = vld [vmem:[%s1 + $0x3c8] sm:$0xff]
      %v562 = vld [vmem:[%s1 + $0x3d0] sm:$0xff]
      %v563 = vld [vmem:[%s1 + $0x3d8] sm:$0xff]
      %v564 = vld [vmem:[%s1 + $0x3e0] sm:$0xff]
      %v565 = vld [vmem:[%s1 + $0x3e8] sm:$0xff]
      %v566 = vld [vmem:[%s1 + $0x3f0] sm:$0xff]
      %v567 = vld [vmem:[%s1 + $0x3f8] sm:$0xff]
      %v568 = vld [vmem:[%s1 + $0x400] sm:$0xff]
      %v569 = vld [vmem:[%s1 + $0x408] sm:$0xff]
      %v570 = vld [vmem:[%s1 + $0x410] sm:$0xff]
      %v571 = vld [vmem:[%s1 + $0x418] sm:$0xff]
      %v572 = vld [vmem:[%s1 + $0x420] sm:$0xff]
      %v573 = vld [vmem:[%s1 + $0x428] sm:$0xff]
      %v574 = vld [vmem:[%s1 + $0x430] sm:$0xff]
      %v575 = vld [vmem:[%s1 + $0x438] sm:$0xff]
      %v576 = vld [vmem:[%s1 + $0x440] sm:$0xff]
      %v577 = vld [vmem:[%s1 + $0x448] sm:$0xff]
      %v578 = vld [vmem:[%s1 + $0x450] sm:$0xff]
      %v579 = vld [vmem:[%s1 + $0x458] sm:$0xff]
      %v580 = vld [vmem:[%s1 + $0x460] sm:$0xff]
      %v581 = vld [vmem:[%s1 + $0x468] sm:$0xff]
      %v582 = vld [vmem:[%s1 + $0x470] sm:$0xff]
      %v583 = vld [vmem:[%s1 + $0x478] sm:$0xff]
      %584 = vmatpush.msra.mxu0 %v455
      %585 = vmatpush.msra.mxu0 %v454
      %586 = vmatpush.msra.mxu0 %v453
      %587 = vmatpush.msra.mxu0 %v452
      %588 = vmatpush.msra.mxu0 %v451
      %589 = vmatpush.msra.mxu0 %v450
      %590 = vmatpush.msra.mxu0 %v449
      %591 = vmatpush.msra.mxu0 %v448
      %592 = vmatpush.msra.mxu0 %v447
      %593 = vmatpush.msra.mxu0 %v446
      %594 = vmatpush.msra.mxu0 %v445
      %595 = vmatpush.msra.mxu0 %v444
      %596 = vmatpush.msra.mxu0 %v443
      %597 = vmatpush.msra.mxu0 %v442
      %598 = vmatpush.msra.mxu0 %v441
      %599 = vmatpush.msra.mxu0 %v440
      %600 = vmatmul.f32.gmra.mxu0 %v316
      %v601 = vpop.f32.mrf.mxu0
      %v602 = vadd.f32 0.0, %v601
      %603 = vmatmul.f32.gmra.mxu0 %v317
      %v604 = vpop.f32.mrf.mxu0
      %v605 = vadd.f32 0.0, %v604
      %606 = vdwg.mxu0
      %607 = vmatpush.msra.mxu0 %v471
      %608 = vmatpush.msra.mxu0 %v470
      %609 = vmatpush.msra.mxu0 %v469
      %610 = vmatpush.msra.mxu0 %v468
      %611 = vmatpush.msra.mxu0 %v467
      %612 = vmatpush.msra.mxu0 %v466
      %613 = vmatpush.msra.mxu0 %v465
      %614 = vmatpush.msra.mxu0 %v464
      %615 = vmatpush.msra.mxu0 %v463
      %616 = vmatpush.msra.mxu0 %v462
      %617 = vmatpush.msra.mxu0 %v461
      %618 = vmatpush.msra.mxu0 %v460
      %619 = vmatpush.msra.mxu0 %v459
      %620 = vmatpush.msra.mxu0 %v458
      %621 = vmatpush.msra.mxu0 %v457
      %622 = vmatpush.msra.mxu0 %v456
      %623 = vmatmul.f32.gmra.mxu0 %v341
      %v624 = vpop.f32.mrf.mxu0
      %v625 = vadd.f32 %v602, %v624
      %626 = vmatmul.f32.gmra.mxu0 %v342
      %v627 = vpop.f32.mrf.mxu0
      %v628 = vadd.f32 %v605, %v627
      %629 = vdwg.mxu0
      %630 = vmatpush.msra.mxu0 %v487
      %631 = vmatpush.msra.mxu0 %v486
      %632 = vmatpush.msra.mxu0 %v485
      %633 = vmatpush.msra.mxu0 %v484
      %634 = vmatpush.msra.mxu0 %v483
      %635 = vmatpush.msra.mxu0 %v482
      %636 = vmatpush.msra.mxu0 %v481
      %637 = vmatpush.msra.mxu0 %v480
      %638 = vmatpush.msra.mxu0 %v479
      %639 = vmatpush.msra.mxu0 %v478
      %640 = vmatpush.msra.mxu0 %v477
      %641 = vmatpush.msra.mxu0 %v476
      %642 = vmatpush.msra.mxu0 %v475
      %643 = vmatpush.msra.mxu0 %v474
      %644 = vmatpush.msra.mxu0 %v473
      %645 = vmatpush.msra.mxu0 %v472
      %646 = vmatmul.f32.gmra.mxu0 %v354
      %v647 = vpop.f32.mrf.mxu0
      %v648 = vadd.f32 %v625, %v647
      %649 = vmatmul.f32.gmra.mxu0 %v355
      %v650 = vpop.f32.mrf.mxu0
      %v651 = vadd.f32 %v628, %v650
      %652 = vdwg.mxu0
      %653 = vmatpush.msra.mxu0 %v503
      %654 = vmatpush.msra.mxu0 %v502
      %655 = vmatpush.msra.mxu0 %v501
      %656 = vmatpush.msra.mxu0 %v500
      %657 = vmatpush.msra.mxu0 %v499
      %658 = vmatpush.msra.mxu0 %v498
      %659 = vmatpush.msra.mxu0 %v497
      %660 = vmatpush.msra.mxu0 %v496
      %661 = vmatpush.msra.mxu0 %v495
      %662 = vmatpush.msra.mxu0 %v494
      %663 = vmatpush.msra.mxu0 %v493
      %664 = vmatpush.msra.mxu0 %v492
      %665 = vmatpush.msra.mxu0 %v491
      %666 = vmatpush.msra.mxu0 %v490
      %667 = vmatpush.msra.mxu0 %v489
      %668 = vmatpush.msra.mxu0 %v488
      %669 = vmatmul.f32.gmra.mxu0 %v363
      %v670 = vpop.f32.mrf.mxu0
      %v671 = vadd.f32 %v648, %v670
      %672 = vmatmul.f32.gmra.mxu0 %v365
      %v673 = vpop.f32.mrf.mxu0
      %v674 = vadd.f32 %v651, %v673
      %675 = vdwg.mxu0
      %676 = vmatpush.msra.mxu0 %v519
      %677 = vmatpush.msra.mxu0 %v518
      %678 = vmatpush.msra.mxu0 %v517
      %679 = vmatpush.msra.mxu0 %v516
      %680 = vmatpush.msra.mxu0 %v515
      %681 = vmatpush.msra.mxu0 %v514
      %682 = vmatpush.msra.mxu0 %v513
      %683 = vmatpush.msra.mxu0 %v512
      %684 = vmatpush.msra.mxu0 %v511
      %685 = vmatpush.msra.mxu0 %v510
      %686 = vmatpush.msra.mxu0 %v509
      %687 = vmatpush.msra.mxu0 %v508
      %688 = vmatpush.msra.mxu0 %v507
      %689 = vmatpush.msra.mxu0 %v506
      %690 = vmatpush.msra.mxu0 %v505
      %691 = vmatpush.msra.mxu0 %v504
      %692 = vmatmul.f32.gmra.mxu0 %v383
      %v693 = vpop.f32.mrf.mxu0
      %v694 = vadd.f32 %v671, %v693
      %695 = vmatmul.f32.gmra.mxu0 %v384
      %v696 = vpop.f32.mrf.mxu0
      %v697 = vadd.f32 %v674, %v696
      %698 = vdwg.mxu0
      %699 = vmatpush.msra.mxu0 %v535
      %700 = vmatpush.msra.mxu0 %v534
      %701 = vmatpush.msra.mxu0 %v533
      %702 = vmatpush.msra.mxu0 %v532
      %703 = vmatpush.msra.mxu0 %v531
      %704 = vmatpush.msra.mxu0 %v530
      %705 = vmatpush.msra.mxu0 %v529
      %706 = vmatpush.msra.mxu0 %v528
      %707 = vmatpush.msra.mxu0 %v527
      %708 = vmatpush.msra.mxu0 %v526
      %709 = vmatpush.msra.mxu0 %v525
      %710 = vmatpush.msra.mxu0 %v524
      %711 = vmatpush.msra.mxu0 %v523
      %712 = vmatpush.msra.mxu0 %v522
      %713 = vmatpush.msra.mxu0 %v521
      %714 = vmatpush.msra.mxu0 %v520
      %715 = vmatmul.f32.gmra.mxu0 %v395
      %v716 = vpop.f32.mrf.mxu0
      %v717 = vadd.f32 %v694, %v716
      %718 = vmatmul.f32.gmra.mxu0 %v396
      %v719 = vpop.f32.mrf.mxu0
      %v720 = vadd.f32 %v697, %v719
      %721 = vdwg.mxu0
      %722 = vmatpush.msra.mxu0 %v551
      %723 = vmatpush.msra.mxu0 %v550
      %724 = vmatpush.msra.mxu0 %v549
      %725 = vmatpush.msra.mxu0 %v548
      %726 = vmatpush.msra.mxu0 %v547
      %727 = vmatpush.msra.mxu0 %v546
      %728 = vmatpush.msra.mxu0 %v545
      %729 = vmatpush.msra.mxu0 %v544
      %730 = vmatpush.msra.mxu0 %v543
      %731 = vmatpush.msra.mxu0 %v542
      %732 = vmatpush.msra.mxu0 %v541
      %733 = vmatpush.msra.mxu0 %v540
      %734 = vmatpush.msra.mxu0 %v539
      %735 = vmatpush.msra.mxu0 %v538
      %736 = vmatpush.msra.mxu0 %v537
      %737 = vmatpush.msra.mxu0 %v536
      %738 = vmatmul.f32.gmra.mxu0 %v404
      %v739 = vpop.f32.mrf.mxu0
      %v740 = vadd.f32 %v717, %v739
      %741 = vmatmul.f32.gmra.mxu0 %v406
      %v742 = vpop.f32.mrf.mxu0
      %v743 = vadd.f32 %v720, %v742
      %744 = vdwg.mxu0
      %745 = vmatpush.msra.mxu0 %v567
      %746 = vmatpush.msra.mxu0 %v566
      %747 = vmatpush.msra.mxu0 %v565
      %748 = vmatpush.msra.mxu0 %v564
      %749 = vmatpush.msra.mxu0 %v563
      %750 = vmatpush.msra.mxu0 %v562
      %751 = vmatpush.msra.mxu0 %v561
      %752 = vmatpush.msra.mxu0 %v560
      %753 = vmatpush.msra.mxu0 %v559
      %754 = vmatpush.msra.mxu0 %v558
      %755 = vmatpush.msra.mxu0 %v557
      %756 = vmatpush.msra.mxu0 %v556
      %757 = vmatpush.msra.mxu0 %v555
      %758 = vmatpush.msra.mxu0 %v554
      %759 = vmatpush.msra.mxu0 %v553
      %760 = vmatpush.msra.mxu0 %v552
      %761 = vmatmul.f32.gmra.mxu0 %v424
      %v762 = vpop.f32.mrf.mxu0
      %v763 = vadd.f32 %v740, %v762
      %764 = vmatmul.f32.gmra.mxu0 %v425
      %v765 = vpop.f32.mrf.mxu0
      %v766 = vadd.f32 %v743, %v765
      %767 = vdwg.mxu0
      %768 = vmatpush.msra.mxu0 %v583
      %769 = vmatpush.msra.mxu0 %v582
      %770 = vmatpush.msra.mxu0 %v581
      %771 = vmatpush.msra.mxu0 %v580
      %772 = vmatpush.msra.mxu0 %v579
      %773 = vmatpush.msra.mxu0 %v578
      %774 = vmatpush.msra.mxu0 %v577
      %775 = vmatpush.msra.mxu0 %v576
      %776 = vmatpush.msra.mxu0 %v575
      %777 = vmatpush.msra.mxu0 %v574
      %778 = vmatpush.msra.mxu0 %v573
      %779 = vmatpush.msra.mxu0 %v572
      %780 = vmatpush.msra.mxu0 %v571
      %781 = vmatpush.msra.mxu0 %v570
      %782 = vmatpush.msra.mxu0 %v569
      %783 = vmatpush.msra.mxu0 %v568
      %784 = vmatmul.f32.gmra.mxu0 %v436
      %v785 = vpop.f32.mrf.mxu0
      %v786 = vadd.f32 %v763, %v785
      %787 = vmatmul.f32.gmra.mxu0 %v437
      %v788 = vpop.f32.mrf.mxu0
      %v789 = vadd.f32 %v766, %v788
      %790 = vdwg.mxu0
      %791 = vst [vmem:[%s262] sm:$0xff] %v786
      %792 = vst [vmem:[%s262 + $0x8] sm:$0xff] %v789
      %v793 = vadd.f32 %v786, %v789
      %v794 = vrot.slane %v793, 4
      %v795 = vadd.f32 %v793, %v794
      %v796 = vrot.slane %v795, 2
      %v797 = vadd.f32 %v795, %v796
      %v798 = vrot.slane %v797, 1
      %v799 = vadd.f32 %v797, %v798
      %800 = vst [vmem:[%s265] sm:$0x1] %v799
      %v801 = vmul.f32 %v786, %v786
      %v802 = vmul.f32 %v789, %v789
      %v803 = vadd.f32 %v801, %v802
      %v804 = vrot.slane %v803, 4
      %v805 = vadd.f32 %v803, %v804
      %v806 = vrot.slane %v805, 2
      %v807 = vadd.f32 %v805, %v806
      %v808 = vrot.slane %v807, 1
      %v809 = vadd.f32 %v807, %v808
      %810 = vst [vmem:[%s268] sm:$0x1] %v809
      %p811 = scmp.lt.s32.totalorder %s18, 1
      %s812 = scalar_select %p811, %s18, 1
      %s813 = smul.addr %s812, 2
      %s814 = smul.addr %s813, 8
      %s815 = scalar_lea.vmem %s4, %s814
      %p816 = scmp.lt.s32.totalorder %s18, 1
      %s817 = scalar_select %p816, %s18, 1
      %s818 = scalar_lea.vmem %s5, %s817
      %p819 = scmp.lt.s32.totalorder %s18, 1
      %s820 = scalar_select %p819, %s18, 1
      %s821 = scalar_lea.vmem %s6, %s820
      // Predicated region
      $region37: #{residual_block_nchw.3} parent=35 // pred_check
        %p822 = pneg %p125
      $region38: #{residual_block_nchw.3} parent=35 // pred_check_branch
        %824 = sbr.rel (%p822) target = $region40
      $region39: #{residual_block_nchw.3} parent=35 // pred_region
        _
      $region40: #{residual_block_nchw.3} parent=35 // pred_fallthru
        _
      // Predicated region
      $region41: #{residual_block_nchw.3} parent=35 // pred_check
        %p825 = pneg %p151
      $region42: #{residual_block_nchw.3} parent=35 // pred_check_branch
        %827 = sbr.rel (%p825) target = $region44
      $region43: #{residual_block_nchw.3} parent=35 // pred_region
        _
      $region44: #{residual_block_nchw.3} parent=35 // pred_fallthru
        _
      // Predicated region
      $region45: #{residual_block_nchw.3} parent=35 // pred_check
        %p828 = pneg %p177
      $region46: #{residual_block_nchw.3} parent=35 // pred_check_branch
        %830 = sbr.rel (%p828) target = $region48
      $region47: #{residual_block_nchw.3} parent=35 // pred_region
        _
      $region48: #{residual_block_nchw.3} parent=35 // pred_fallthru
        _
    $region36: #{residual_block_nchw.3} parent=5 // pred_fallthru
      _
    %p831 = scmp.le.s32.totalorder 2, %s13
    // Predicated region
    $region49: #{residual_block_nchw.3} parent=5 // pred_check
      %p832 = pneg %p831
    $region50: #{residual_block_nchw.3} parent=5 // pred_check_branch
      %834 = sbr.rel (%p832) target = $region52
    $region51: #{residual_block_nchw.3} parent=5 // pred_region
      %s835 = ssub.s32 %s13, 2
      // Predicated region
      $region53: #{residual_block_nchw.3} parent=51 // pred_check
        %p836 = pneg %p131
      $region54: #{residual_block_nchw.3} parent=51 // pred_check_branch
        %838 = sbr.rel (%p836) target = $region56
      $region55: #{residual_block_nchw.3} parent=51 // pred_region
        %p839 = scmp.lt.s32.totalorder %s19, 1
        %s840 = scalar_select %p839, %s19, 1
        %s841 = smul.addr %s840, 2
        %s842 = smul.addr %s841, 8
        %s843 = scalar_lea.vmem %s4, %s842
      $region56: #{residual_block_nchw.3} parent=51 // pred_fallthru
        _
      // Predicated region
      $region57: #{residual_block_nchw.3} parent=51 // pred_check
        %p844 = pneg %p157
      $region58: #{residual_block_nchw.3} parent=51 // pred_check_branch
        %846 = sbr.rel (%p844) target = $region60
      $region59: #{residual_block_nchw.3} parent=51 // pred_region
        %p847 = scmp.lt.s32.totalorder %s19, 1
        %s848 = scalar_select %p847, %s19, 1
        %s849 = scalar_lea.vmem %s5, %s848
      $region60: #{residual_block_nchw.3} parent=51 // pred_fallthru
        _
      // Predicated region
      $region61: #{residual_block_nchw.3} parent=51 // pred_check
        %p850 = pneg %p183
      $region62: #{residual_block_nchw.3} parent=51 // pred_check_branch
        %852 = sbr.rel (%p850) target = $region64
      $region63: #{residual_block_nchw.3} parent=51 // pred_region
        %p853 = scmp.lt.s32.totalorder %s19, 1
        %s854 = scalar_select %p853, %s19, 1
        %s855 = scalar_lea.vmem %s6, %s854
      $region64: #{residual_block_nchw.3} parent=51 // pred_fallthru
        _
    $region52: #{residual_block_nchw.3} parent=5 // pred_fallthru
      _
  $region6: #{residual_block_nchw.3} parent=0 // loop_footer
    %s17 = sadd.s32 1, %s13
  $region7: #{residual_block_nchw.3} parent=0 // loop_footer_branch
    %12 = sbr.rel target = $region3
  $region8: #{residual_block_nchw.3} parent=0 // loop_exit
    _

// kernel: residual_block_nchw.5
$region0: #{residual_block_nchw.5}
  #allocation0 [shape = 'u32[]', space=smem, size = 0x4, offset = 0x4, fixed_abs, tag = 'smem constant byte address 0x4 - core index']
  #allocation1 [shape = 'u32[72,128]{1,0:T(1,128)}', space=vmem, size = 0x9000, scoped, tag = 'internal scratch']
  %s0 = inlined_call_operand.vmem [shape: f32[2,16,128], index: 0, kind: input, shape index: {}]
  %s1 = inlined_call_operand.vmem [shape: f32[2,16,128], index: 1, kind: input, shape index: {}]
  %s2 = inlined_call_operand.vmem [shape: f32[1,128], index: 2, kind: input, shape index: {}]
  %s3 = inlined_call_operand.vmem [shape: f32[1,128], index: 3, kind: input, shape index: {}]
  %s4 = inlined_call_operand.vmem [shape: f32[2,16,128], index: 4, kind: output, shape index: {}]
  %s5 = sld [smem:[#allocation0]]
  $region49: #{residual_block_nchw.5} parent=0
    _
  %s7 = ssub.s32 1, %s5
  %s8 = scalar_select 0, %s7, %s5
  loop: start=0, step=1, limit=4
  $region2: #{residual_block_nchw.5} parent=0 // loop_pre_header
    _
  $region3: #{residual_block_nchw.5} parent=0 // loop_header
    %s10 = sphi 0, %s14
    %p11 = scmp.ge.s32.totalorder %s10, 4
    %s20 = sphi 0, %s22
    %s23 = sphi 0, %s20
    %s24 = sphi 0, %s23
    %s40 = sphi 0, %s24
    %s46 = sphi 0, %s48
    %s49 = sphi 0, %s46
    %s50 = sphi 0, %s49
    %s66 = sphi 0, %s50
    %s70 = sphi 0, %s70
    %s72 = sphi 0, %s70
    %s73 = sphi 0, %s72
    %s87 = sphi 0, %s73
    %s91 = sphi 0, %s91
    %s93 = sphi 0, %s91
    %s94 = sphi 0, %s93
    %s108 = sphi 0, %s94
    %s114 = sphi 0, %s116
    %s117 = sphi 0, %s114
    %s118 = sphi 0, %s117
    %s134 = sphi 0, %s118
  $region4: #{residual_block_nchw.5} parent=0 // loop_header_branch
    %13 = sbr.rel (%p11) target = $region8
  $region5: #{residual_block_nchw.5} parent=0 // loop_body
    %s15 = ssub.s32 %s10, 1
    %s16 = ssub.s32 %s10, 2
    %s17 = sadd.s32 %s10, 1
    %s18 = ssub.s32 %s10, %s17
    %p19 = scmp.eq.s32.totalorder %s18, 0
    %s21 = sadd.s32 %s20, 1
    %s22 = scalar_select %p19, %s20, %s21
    %p25 = pneg %p19
    %p26 = scmp.eq.s32.totalorder %s10, 1
    %p27 = por %p25, %p26
    %p28 = scmp.ne.s32.totalorder %s20, %s23
    %p29 = scmp.eq.s32.totalorder %s10, 0
    %p30 = por %p28, %p29
    %p31 = scmp.ne.s32.totalorder %s20, %s23
    %p32 = scmp.eq.s32.totalorder %s15, 1
    %p33 = por %p31, %p32
    %p34 = scmp.ne.s32.totalorder %s23, %s24
    %p35 = scmp.eq.s32.totalorder %s15, 0
    %p36 = por %p34, %p35
    %p37 = scmp.ne.s32.totalorder %s23, %s24
    %p38 = scmp.eq.s32.totalorder %s16, 1
    %p39 = por %p37, %p38
    %p41 = scmp.ne.s32.totalorder %s24, %s40
    %p42 = scmp.eq.s32.totalorder %s16, 0
    %p43 = por %p41, %p42
    %s44 = ssub.s32 %s10, %s17
    %p45 = scmp.eq.s32.totalorder %s44, 0
    %s47 = sadd.s32 %s46, 1
    %s48 = scalar_select %p45, %s46, %s47
    %p51 = pneg %p45
    %p52 = scmp.eq.s32.totalorder %s10, 1
    %p53 = por %p51, %p52
    %p54 = scmp.ne.s32.totalorder %s46, %s49
    %p55 = scmp.eq.s32.totalorder %s10, 0
    %p56 = por %p54, %p55
    %p57 = scmp.ne.s32.totalorder %s46, %s49
    %p58 = scmp.eq.s32.totalorder %s15, 1
    %p59 = por %p57, %p58
    %p60 = scmp.ne.s32.totalorder %s49, %s50
    %p61 = scmp.eq.s32.totalorder %s15, 0
    %p62 = por %p60, %p61
    %p63 = scmp.ne.s32.totalorder %s49, %s50
    %p64 = scmp.eq.s32.totalorder %s16, 1
    %p65 = por %p63, %p64
    %p67 = scmp.ne.s32.totalorder %s50, %s66
    %p68 = scmp.eq.s32.totalorder %s16, 0
    %p69 = por %p67, %p68
    %s71 = sadd.s32 %s70, 1
    %p74 = scmp.eq.s32.totalorder %s10, 1
    %p75 = scmp.ne.s32.totalorder %s70, %s72
    %p76 = scmp.eq.s32.totalorder %s10, 0
    %p77 = por %p75, %p76
    %p78 = scmp.ne.s32.totalorder %s70, %s72
    %p79 = scmp.eq.s32.totalorder %s15, 1
    %p80 = por %p78, %p79
    %p81 = scmp.ne.s32.totalorder %s72, %s73
    %p82 = scmp.eq.s32.totalorder %s15, 0
    %p83 = por %p81, %p82
    %p84 = scmp.ne.s32.totalorder %s72, %s73
    %p85 = scmp.eq.s32.totalorder %s16, 1
    %p86 = por %p84, %p85
    %p88 = scmp.ne.s32.totalorder %s73, %s87
    %p89 = scmp.eq.s32.totalorder %s16, 0
    %p90 = por %p88, %p89
    %s92 = sadd.s32 %s91, 1
    %p95 = scmp.eq.s32.totalorder %s10, 1
    %p96 = scmp.ne.s32.totalorder %s91, %s93
    %p97 = scmp.eq.s32.totalorder %s10, 0
    %p98 = por %p96, %p97
    %p99 = scmp.ne.s32.totalorder %s91, %s93
    %p100 = scmp.eq.s32.totalorder %s15, 1
    %p101 = por %p99, %p100
    %p102 = scmp.ne.s32.totalorder %s93, %s94
    %p103 = scmp.eq.s32.totalorder %s15, 0
    %p104 = por %p102, %p103
    %p105 = scmp.ne.s32.totalorder %s93, %s94
    %p106 = scmp.eq.s32.totalorder %s16, 1
    %p107 = por %p105, %p106
    %p109 = scmp.ne.s32.totalorder %s94, %s108
    %p110 = scmp.eq.s32.totalorder %s16, 0
    %p111 = por %p109, %p110
    %s112 = ssub.s32 %s10, %s17
    %p113 = scmp.eq.s32.totalorder %s112, 0
    %s115 = sadd.s32 %s114, 1
    %s116 = scalar_select %p113, %s114, %s115
    %p119 = pneg %p113
    %p120 = scmp.eq.s32.totalorder %s10, 1
    %p121 = por %p119, %p120
    %p122 = scmp.ne.s32.totalorder %s114, %s117
    %p123 = scmp.eq.s32.totalorder %s10, 0
    %p124 = por %p122, %p123
    %p125 = scmp.ne.s32.totalorder %s114, %s117
    %p126 = scmp.eq.s32.totalorder %s15, 1
    %p127 = por %p125, %p126
    %p128 = scmp.ne.s32.totalorder %s117, %s118
    %p129 = scmp.eq.s32.totalorder %s15, 0
    %p130 = por %p128, %p129
    %p131 = scmp.ne.s32.totalorder %s117, %s118
    %p132 = scmp.eq.s32.totalorder %s16, 1
    %p133 = por %p131, %p132
    %p135 = scmp.ne.s32.totalorder %s118, %s134
    %p136 = scmp.eq.s32.totalorder %s16, 0
    %p137 = por %p135, %p136
    %p138 = scmp.le.s32.totalorder 1, %s10
    %p139 = scmp.lt.s32.totalorder %s10, 3
    %p140 = pnand %p138, %p139
    %p141 = pneg %p140
    // Predicated region
    $region9: #{residual_block_nchw.5} parent=5 // pred_check
      _
    $region10: #{residual_block_nchw.5} parent=5 // pred_check_branch
      %143 = sbr.rel (%p140) target = $region12
    $region11: #{residual_block_nchw.5} parent=5 // pred_region
      %s144 = ssub.s32 %s10, 1
      // Predicated region
      $region13: #{residual_block_nchw.5} parent=11 // pred_check
        %p145 = pneg %p83
      $region14: #{residual_block_nchw.5} parent=11 // pred_check_branch
        %147 = sbr.rel (%p145) target = $region16
      $region15: #{residual_block_nchw.5} parent=11 // pred_region
        _
      $region16: #{residual_block_nchw.5} parent=11 // pred_fallthru
        _
      // Predicated region
      $region17: #{residual_block_nchw.5} parent=11 // pred_check
        %p148 = pneg %p104
      $region18: #{residual_block_nchw.5} parent=11 // pred_check_branch
        %150 = sbr.rel (%p148) target = $region20
      $region19: #{residual_block_nchw.5} parent=11 // pred_region
        _
      $region20: #{residual_block_nchw.5} parent=11 // pred_fallthru
        _
    $region12: #{residual_block_nchw.5} parent=5 // pred_fallthru
      _
    %p151 = scmp.lt.s32.totalorder %s10, 2
    // Predicated region
    $region21: #{residual_block_nchw.5} parent=5 // pred_check
      %p152 = pneg %p151
    $region22: #{residual_block_nchw.5} parent=5 // pred_check_branch
      %154 = sbr.rel (%p152) target = $region24
    $region23: #{residual_block_nchw.5} parent=5 // pred_region
      // Predicated region
      $region25: #{residual_block_nchw.5} parent=23 // pred_check
        %p155 = pneg %p30
      $region26: #{residual_block_nchw.5} parent=23 // pred_check_branch
        %157 = sbr.rel (%p155) target = $region28
      $region27: #{residual_block_nchw.5} parent=23 // pred_region
        %p158 = scmp.lt.s32.totalorder %s10, 1
        %s159 = scalar_select %p158, %s10, 1
        %s160 = smul.addr %s159, 2
        %s161 = smul.addr %s160, 8
        %s162 = scalar_lea.vmem %s0, %s161
      $region28: #{residual_block_nchw.5} parent=23 // pred_fallthru
        _
      // Predicated region
      $region29: #{residual_block_nchw.5} parent=23 // pred_check
        %p163 = pneg %p56
      $region30: #{residual_block_nchw.5} parent=23 // pred_check_branch
        %165 = sbr.rel (%p163) target = $region32
      $region31: #{residual_block_nchw.5} parent=23 // pred_region
        %p166 = scmp.lt.s32.totalorder %s10, 1
        %s167 = scalar_select %p166, %s10, 1
        %s168 = smul.addr %s167, 2
        %s169 = smul.addr %s168, 8
        %s170 = scalar_lea.vmem %s1, %s169
      $region32: #{residual_block_nchw.5} parent=23 // pred_fallthru
        _
    $region24: #{residual_block_nchw.5} parent=5 // pred_fallthru
      _
    %p171 = scmp.le.s32.totalorder 1, %s10
    %p172 = scmp.lt.s32.totalorder %s10, 3
    %p173 = pnand %p171, %p172
    %p174 = pneg %p173
    // Predicated region
    $region33: #{residual_block_nchw.5} parent=5 // pred_check
      _
    $region34: #{residual_block_nchw.5} parent=5 // pred_check_branch
      %176 = sbr.rel (%p173) target = $region36
    $region35: #{residual_block_nchw.5} parent=5 // pred_region
      %s177 = ssub.s32 %s10, 1
      %p178 = scmp.lt.s32.totalorder %s15, 1
      %s179 = scalar_select %p178, %s15, 1
      %s180 = smul.addr %s179, 2
      %s181 = smul.addr %s180, 8
      %s182 = scalar_lea.vmem %s0, %s181
      %p183 = pneg %p36
      %p184 = pneg %p33
      %p185 = scmp.lt.s32.totalorder %s15, 1
      %s186 = scalar_select %p185, %s15, 1
      %s187 = smul.addr %s186, 2
      %s188 = smul.addr %s187, 8
      %s189 = scalar_lea.vmem %s1, %s188
      %p190 = pneg %p62
      %p191 = pneg %p59
      %p192 = pneg %p83
      %p193 = pneg %p80
      %p194 = pneg %p104
      %p195 = pneg %p101
      %p196 = pneg %p130
      %p197 = pneg %p127
      %p198 = scmp.lt.s32.totalorder %s15, 1
      %s199 = scalar_select %p198, %s15, 1
      %s200 = smul.addr %s199, 2
      %s201 = smul.addr %s200, 8
      %s202 = scalar_lea.vmem %s4, %s201
      %p203 = scmp.lt.s32.totalorder %s15, 1
      %s204 = scalar_select %p203, %s15, 1
      %s205 = smul.addr %s204, 2
      %s206 = smul.addr %s205, 8
      %s207 = scalar_lea.vmem %s0, %s206
      %p208 = scmp.lt.s32.totalorder %s15, 1
      %s209 = scalar_select %p208, %s15, 1
      %s210 = smul.addr %s209, 2
      %s211 = smul.addr %s210, 8
      %s212 = scalar_lea.vmem %s1, %s211
      %p213 = scmp.lt.s32.totalorder %s15, 1
      %s214 = scalar_select %p213, %s15, 1
      %s215 = smul.addr %s214, 2
      %s216 = smul.addr %s215, 8
      %s217 = scalar_lea.vmem %s4, %s216
      %v218 = vld [vmem:[%s207] sm:$0xff]
      %v219 = vld [vmem:[%s207 + $0x8] sm:$0xff]
      %v220 = vld [vmem:[%s2] sm:$0x1]
      %v222 = vperm.slane %v220, 0
      %v224 = vmul.f32 %v218, %v222
      %v225 = vmul.f32 %v219, %v222
      %v226 = vld [vmem:[%s3] sm:$0x1]
      %v228 = vperm.slane %v226, 0
      %v230 = vadd.f32 %v224, %v228
      %v231 = vadd.f32 %v225, %v228
      %v232 = vld [vmem:[%s212] sm:$0xff]
      %v233 = vld [vmem:[%s212 + $0x8] sm:$0xff]
      %v234 = vadd.f32 %v230, %v232
      %v235 = vadd.f32 %v231, %v233
      %v236 = vmax.f32 %v234, 0.0
      %v237 = vmax.f32 %v235, 0.0
      %238 = vst [vmem:[%s217] sm:$0xff] %v236
      %239 = vst [vmem:[%s217 + $0x8] sm:$0xff] %v237
      %p240 = scmp.lt.s32.totalorder %s15, 1
      %s241 = scalar_select %p240, %s15, 1
      %s242 = smul.addr %s241, 2
      %s243 = smul.addr %s242, 8
      %s244 = scalar_lea.vmem %s4, %s243
      // Predicated region
      $region37: #{residual_block_nchw.5} parent=35 // pred_check
        %p245 = pneg %p127
      $region38: #{residual_block_nchw.5} parent=35 // pred_check_branch
        %247 = sbr.rel (%p245) target = $region40
      $region39: #{residual_block_nchw.5} parent=35 // pred_region
        _
      $region40: #{residual_block_nchw.5} parent=35 // pred_fallthru
        _
    $region36: #{residual_block_nchw.5} parent=5 // pred_fallthru
      _
    %p248 = scmp.le.s32.totalorder 2, %s10
    // Predicated region
    $region41: #{residual_block_nchw.5} parent=5 // pred_check
      %p249 = pneg %p248
    $region42: #{residual_block_nchw.5} parent=5 // pred_check_branch
      %251 = sbr.rel (%p249) target = $region44
    $region43: #{residual_block_nchw.5} parent=5 // pred_region
      %s252 = ssub.s32 %s10, 2
      // Predicated region
      $region45: #{residual_block_nchw.5} parent=43 // pred_check
        %p253 = pneg %p133
      $region46: #{residual_block_nchw.5} parent=43 // pred_check_branch
        %255 = sbr.rel (%p253) target = $region48
      $region47: #{residual_block_nchw.5} parent=43 // pred_region
        %p256 = scmp.lt.s32.totalorder %s16, 1
        %s257 = scalar_select %p256, %s16, 1
        %s258 = smul.addr %s257, 2
        %s259 = smul.addr %s258, 8
        %s260 = scalar_lea.vmem %s4, %s259
      $region48: #{residual_block_nchw.5} parent=43 // pred_fallthru
        _
    $region44: #{residual_block_nchw.5} parent=5 // pred_fallthru
      _
  $region6: #{residual_block_nchw.5} parent=0 // loop_footer
    %s14 = sadd.s32 1, %s10
  $region7: #{residual_block_nchw.5} parent=0 // loop_footer_branch
    %9 = sbr.rel target = $region3
  $region8: #{residual_block_nchw.5} parent=0 // loop_exit
    _

</llo_original>
